<compile_context>
chip_gen: v7x
topology: tpu7x:2x2x1
jax: 0.10.0
libtpu: 0.0.40
codegen_flags: <defaults>
</compile_context>

<pallas_src>
import functools

import jax
import jax.numpy as jnp
import numpy as np
from jax import lax
from jax.experimental import pallas as pl
from jax.experimental.pallas import tpu as pltpu


# ----------------------------- geometry helper ------------------------------

def _round_up(x, m):
    return -(-x // m) * m


def _pad_geometry(W, HW):
    """Scratch layout for the H-padded flat image used by the 3x3 conv."""
    off = _round_up(W + 1, 8)          # aligned scratch row holding x2[0, 0]
    base = off - (W + 1)               # tap (ky,kx) for output o reads row base+o+ky*W+kx
    scr_rows = _round_up(off + HW + W + 1, 8)   # covers the largest tap window
    return off, base, scr_rows


# ------------------------------ fused kernel --------------------------------

def _decoder_kernel(H, W, x_ref, w_in_ref, b_in_ref, w_r1_ref, b_r1_ref,
                    w3_ref, b_r2_ref, w_f_ref, b_f_ref, o_ref, x2p_ref):
    HW = H * W
    off, base, scr_rows = _pad_geometry(W, HW)
    bf16 = jnp.bfloat16

    # ---- in_proj (1x1) -> residual_conv_1 (1x1) -> add -> relu -------------
    x = x_ref[0]                                              # (HW, cin_pad) bf16
    x1 = jnp.dot(x, w_in_ref[...],
                 preferred_element_type=jnp.float32) + b_in_ref[...]
    y = jnp.dot(x1.astype(bf16), w_r1_ref[...],
                preferred_element_type=jnp.float32) + b_r1_ref[...]
    x2 = jnp.maximum(y + x1, 0.0)                             # (HW, ch) f32

    # ---- residual_conv_2 (3x3, padding=1) as 9 shifted-window matmuls ------
    # scratch: x2[h, w] lives at row off + h*W + w; halo rows stay zero.
    # Only the small halo rows are re-zeroed (interior fully overwritten);
    # done every step so it stays correct when the grid is sharded across TCs.
    nch = x2p_ref.shape[1]
    x2p_ref[0:off, :] = jnp.zeros((off, nch), bf16)
    x2p_ref[off + HW:scr_rows, :] = jnp.zeros((scr_rows - off - HW, nch), bf16)
    x2p_ref[off:off + HW, :] = x2.astype(bf16)

    # column edge masks built in-kernel (kill left/right wrap of kx != 1 taps)
    row = lax.broadcasted_iota(jnp.int32, (HW, 1), 0)
    if W & (W - 1) == 0:                       # power-of-two width: cheap AND
        col = jnp.bitwise_and(row, W - 1)
    else:
        col = row % W
    not_left = col != 0                        # (HW, 1) bool: False where w == 0
    not_right = col != (W - 1)                 # False where w == W - 1

    acc = b_r2_ref[...] + x2                   # bias + residual, f32
    for ky in range(3):
        for kx in range(3):
            s0 = base + ky * W + kx
            lhs = x2p_ref[s0:s0 + HW, :]       # (HW, ch) bf16
            if kx == 0:
                lhs = jnp.where(not_left, lhs, jnp.zeros_like(lhs))
            elif kx == 2:
                lhs = jnp.where(not_right, lhs, jnp.zeros_like(lhs))
            acc = acc + jnp.dot(lhs, w3_ref[ky * 3 + kx],
                                preferred_element_type=jnp.float32)
    x3 = jnp.maximum(acc, 0.0)                 # (HW, ch) f32

    # ---- strided_t_conv_1 o strided_t_conv_2, fused into ONE matmul --------
    y2 = jnp.dot(x3.astype(bf16), w_f_ref[...],
                 preferred_element_type=jnp.float32) + b_f_ref[...]   # (HW, 16*cout)
    o_ref[0] = y2.astype(o_ref.dtype)          # bf16 writeback


# ----------------------------- decoder forward ------------------------------

def decoder_forward(x_nchw, params):
    """Pallas implementation of Decoder.forward. Input / output are NCHW f32."""
    B, cin, H, W = x_nchw.shape
    ch = params["w_in"].shape[0]          # hidden_dim
    cout = params["w_t2"].shape[1]        # output_dim
    HW = H * W
    bf16, f32 = jnp.bfloat16, jnp.float32
    cin_pad = _round_up(cin, 8)

    # activations: NCHW -> channels-last rows (B, H*W, cin_pad), zero-padded ch
    x_rows = jnp.transpose(x_nchw, (0, 2, 3, 1)).reshape(B, HW, cin).astype(bf16)
    x_rows = jnp.pad(x_rows, ((0, 0), (0, 0), (0, cin_pad - cin)))

    # 1x1 convs as matmuls (in_proj weight rows zero-padded to cin_pad)
    w_in = jnp.transpose(params["w_in"][:, :, 0, 0])                    # (cin, ch)
    w_in = jnp.pad(w_in, ((0, cin_pad - cin), (0, 0))).astype(bf16)
    b_in = params["b_in"][None, :].astype(f32)
    w_r1 = jnp.transpose(params["w_r1"][:, :, 0, 0]).astype(bf16)       # (ch, ch)
    b_r1 = params["b_r1"][None, :].astype(f32)

    # 3x3 conv: 9 taps, tap index t = ky*3 + kx, each (ch_in, ch_out)
    w3 = jnp.transpose(params["w_r2"], (2, 3, 1, 0)).reshape(9, ch, ch).astype(bf16)
    b_r2 = params["b_r2"][None, :].astype(f32)

    # ConvTranspose2d(ch,ch,2,2) o ConvTranspose2d(ch,cout,2,2): both are purely
    # per-pixel (kernel == stride) with no nonlinearity between them, so fuse
    # exactly into one (ch, 16*cout) matrix.  Column order = (dy1,dx1,dy2,dx2,c).
    w2_small = jnp.transpose(params["w_t2"], (0, 2, 3, 1)).reshape(ch, 4 * cout)  # f32
    wt1_3d = jnp.transpose(params["w_t1"], (0, 2, 3, 1)).reshape(ch, 4, ch)       # f32
    w_fused = jnp.einsum("iaj,jc->iac", wt1_3d, w2_small)
    w_fused = w_fused.reshape(ch, 16 * cout).astype(bf16)
    b_block = params["b_t1"] @ w2_small + jnp.tile(params["b_t2"], 4)   # (4*cout,)
    b_fused = jnp.tile(b_block, 4)[None, :].astype(f32)                 # (1, 16*cout)

    kernel = functools.partial(_decoder_kernel, H, W)
    _, _, scr_rows = _pad_geometry(W, HW)

    out_rows = pl.pallas_call(
        kernel,
        out_shape=jax.ShapeDtypeStruct((B, HW, 16 * cout), bf16),
        grid_spec=pltpu.PrefetchScalarGridSpec(
            num_scalar_prefetch=0,
            grid=(B,),
            in_specs=[
                pl.BlockSpec((1, HW, cin_pad), lambda b: (b, 0, 0)),
                pl.BlockSpec((cin_pad, ch), lambda b: (0, 0)),
                pl.BlockSpec((1, ch), lambda b: (0, 0)),
                pl.BlockSpec((ch, ch), lambda b: (0, 0)),
                pl.BlockSpec((1, ch), lambda b: (0, 0)),
                pl.BlockSpec((9, ch, ch), lambda b: (0, 0, 0)),
                pl.BlockSpec((1, ch), lambda b: (0, 0)),
                pl.BlockSpec((ch, 16 * cout), lambda b: (0, 0)),
                pl.BlockSpec((1, 16 * cout), lambda b: (0, 0)),
            ],
            out_specs=pl.BlockSpec((1, HW, 16 * cout), lambda b: (b, 0, 0)),
            scratch_shapes=[pltpu.VMEM((scr_rows, ch), bf16)],
        ),
        compiler_params=pltpu.CompilerParams(
            dimension_semantics=("parallel",),
            vmem_limit_bytes=32 * 1024 * 1024,
        ),
    )(x_rows, w_in, b_in, w_r1, b_r1, w3, b_r2, w_fused, b_fused)

    # pixel unshuffle on bf16 data; columns are (dy1, dx1, dy2, dx2, c):
    # h_out = 4h + 2*dy1 + dy2,  w_out = 4w + 2*dx1 + dx2.
    out = out_rows.reshape(B, H, W, 2, 2, 2, 2, cout)
    out = out.transpose(0, 7, 1, 3, 5, 2, 4, 6).reshape(B, cout, 4 * H, 4 * W)
    return out.astype(f32)


# -------------------------- pure-JAX reference ------------------------------

def decoder_reference(x, p):
    def conv(x, w, b, pad):
        out = lax.conv_general_dilated(
            x, w, (1, 1), [(pad, pad), (pad, pad)],
            dimension_numbers=("NCHW", "OIHW", "NCHW"))
        return out + b[None, :, None, None]

    def tconv(x, w, b, k, s):
        w_f = jnp.flip(w, axis=(2, 3)).transpose(1, 0, 2, 3)   # (O,I,kH,kW)
        out = lax.conv_general_dilated(
            x, w_f, (1, 1), [(k - 1, k - 1), (k - 1, k - 1)],
            lhs_dilation=(s, s),
            dimension_numbers=("NCHW", "OIHW", "NCHW"))
        return out + b[None, :, None, None]

    x1 = conv(x, p["w_in"], p["b_in"], 0)
    y = conv(x1, p["w_r1"], p["b_r1"], 0)
    x2 = jax.nn.relu(y + x1)
    y = conv(x2, p["w_r2"], p["b_r2"], 1)
    x3 = jax.nn.relu(y + x2)
    y = tconv(x3, p["w_t1"], p["b_t1"], 2, 2)
    y = tconv(y, p["w_t2"], p["b_t2"], 2, 2)
    return y


# ------------------------------ param init ----------------------------------

def init_params(key, input_dim, hidden_dim, output_dim):
    """Deterministic PyTorch-Conv2d-style (uniform +/- 1/sqrt(fan_in)) init."""
    def u(key, shape, fan_in):
        bound = 1.0 / np.sqrt(fan_in)
        return jax.random.uniform(key, shape, jnp.float32, -bound, bound)

    ks = jax.random.split(key, 10)
    return {
        # Conv2d weights: (out, in, kH, kW)
        "w_in": u(ks[0], (hidden_dim, input_dim, 1, 1), input_dim * 1 * 1),
        "b_in": u(ks[1], (hidden_dim,), input_dim * 1 * 1),
        "w_r1": u(ks[2], (hidden_dim, hidden_dim, 1, 1), hidden_dim * 1 * 1),
        "b_r1": u(ks[3], (hidden_dim,), hidden_dim * 1 * 1),
        "w_r2": u(ks[4], (hidden_dim, hidden_dim, 3, 3), hidden_dim * 3 * 3),
        "b_r2": u(ks[5], (hidden_dim,), hidden_dim * 3 * 3),
        # ConvTranspose2d weights: (in, out, kH, kW)
        "w_t1": u(ks[6], (hidden_dim, hidden_dim, 2, 2), hidden_dim * 2 * 2),
        "b_t1": u(ks[7], (hidden_dim,), hidden_dim * 2 * 2),
        "w_t2": u(ks[8], (hidden_dim, output_dim, 2, 2), hidden_dim * 2 * 2),
        "b_t2": u(ks[9], (output_dim,), hidden_dim * 2 * 2),
    }


# --------------------------------- main --------------------------------------

if __name__ == "__main__":
    # Small shapes consistent with the module (hidden_dim shrunk for a quick run).
    B, input_dim, hidden_dim, output_dim, H, W = 2, 3, 64, 3, 8, 8

    key = jax.random.PRNGKey(0)
    k_x, k_p = jax.random.split(key)
    x = jax.random.normal(k_x, (B, input_dim, H, W), jnp.float32)   # NCHW
    params = init_params(k_p, input_dim, hidden_dim, output_dim)

    out = jax.jit(decoder_forward)(x, params)
    out = jax.block_until_ready(out)
    assert out.shape == (B, output_dim, 4 * H, 4 * W), out.shape

    ref = jax.block_until_ready(decoder_reference(x, params))
    # bf16 MXU operands / bf16 writeback with f32 accumulation -> loosened tol.
    np.testing.assert_allclose(np.asarray(out), np.asarray(ref),
                               rtol=4e-2, atol=4e-2)

    print("KERNEL_OK")
</pallas_src>

<mosaic_0001>
module attributes {stable_mosaic.version = 11 : i64} {
  func.func @_decoder_kernel(%arg0: i32, %arg1: memref<1x64x8xbf16, #tpu.memory_space<vmem>>, %arg2: memref<8x64xbf16, #tpu.memory_space<vmem>>, %arg3: memref<1x64xf32, #tpu.memory_space<vmem>>, %arg4: memref<64x64xbf16, #tpu.memory_space<vmem>>, %arg5: memref<1x64xf32, #tpu.memory_space<vmem>>, %arg6: memref<9x64x64xbf16, #tpu.memory_space<vmem>>, %arg7: memref<1x64xf32, #tpu.memory_space<vmem>>, %arg8: memref<64x48xbf16, #tpu.memory_space<vmem>>, %arg9: memref<1x48xf32, #tpu.memory_space<vmem>>, %arg10: memref<1x64x48xbf16, #tpu.memory_space<vmem>>, %arg11: memref<96x64xbf16, #tpu.memory_space<vmem>>) attributes {dimension_semantics = [#tpu.dimension_semantics<parallel>], iteration_bounds = array<i64: 2>, scalar_prefetch = 0 : i64, scratch_operands = 1 : i64, tpu.core_type = #tpu.core_type<tc>, window_params = [{transform_indices = @transform_0, window_bounds = array<i64: 1, 64, 8>}, {pipeline_mode = #tpu.pipeline_mode<synchronous>, transform_indices = @transform_1, window_bounds = array<i64: 8, 64>}, {pipeline_mode = #tpu.pipeline_mode<synchronous>, transform_indices = @transform_2, window_bounds = array<i64: 1, 64>}, {pipeline_mode = #tpu.pipeline_mode<synchronous>, transform_indices = @transform_3, window_bounds = array<i64: 64, 64>}, {pipeline_mode = #tpu.pipeline_mode<synchronous>, transform_indices = @transform_4, window_bounds = array<i64: 1, 64>}, {pipeline_mode = #tpu.pipeline_mode<synchronous>, transform_indices = @transform_5, window_bounds = array<i64: 9, 64, 64>}, {pipeline_mode = #tpu.pipeline_mode<synchronous>, transform_indices = @transform_6, window_bounds = array<i64: 1, 64>}, {pipeline_mode = #tpu.pipeline_mode<synchronous>, transform_indices = @transform_7, window_bounds = array<i64: 64, 48>}, {pipeline_mode = #tpu.pipeline_mode<synchronous>, transform_indices = @transform_8, window_bounds = array<i64: 1, 48>}, {transform_indices = @transform_9, window_bounds = array<i64: 1, 64, 48>}]} {
    %c0 = arith.constant 0 : index
    %c0_0 = arith.constant 0 : index
    %c0_1 = arith.constant 0 : index
    %0 = vector.load %arg1[%c0, %c0_0, %c0_1] : memref<1x64x8xbf16, #tpu.memory_space<vmem>>, vector<1x64x8xbf16>
    %1 = vector.shape_cast %0 : vector<1x64x8xbf16> to vector<64x8xbf16>
    %c0_2 = arith.constant 0 : index
    %c0_3 = arith.constant 0 : index
    %2 = vector.load %arg2[%c0_2, %c0_3] : memref<8x64xbf16, #tpu.memory_space<vmem>>, vector<8x64xbf16>
    %cst = arith.constant dense<0.000000e+00> : vector<64x64xf32>
    %3 = tpu.matmul %1, %2, %cst {dimension_numbers = #tpu.dot_dimension_numbers<[1], [0], [0], [1], [0, 0, 1, 1], [], []>} : vector<64x8xbf16>, vector<8x64xbf16>, vector<64x64xf32> -> vector<64x64xf32>
    %c0_4 = arith.constant 0 : index
    %c0_5 = arith.constant 0 : index
    %4 = vector.load %arg3[%c0_4, %c0_5] : memref<1x64xf32, #tpu.memory_space<vmem>>, vector<1x64xf32>
    %5 = vector.broadcast %4 : vector<1x64xf32> to vector<64x64xf32>
    %6 = arith.addf %3, %5 : vector<64x64xf32>
    %7 = arith.truncf %6 : vector<64x64xf32> to vector<64x64xbf16>
    %c0_6 = arith.constant 0 : index
    %c0_7 = arith.constant 0 : index
    %8 = vector.load %arg4[%c0_6, %c0_7] : memref<64x64xbf16, #tpu.memory_space<vmem>>, vector<64x64xbf16>
    %cst_8 = arith.constant dense<0.000000e+00> : vector<64x64xf32>
    %9 = tpu.matmul %7, %8, %cst_8 {dimension_numbers = #tpu.dot_dimension_numbers<[1], [0], [0], [1], [0, 0, 1, 1], [], []>} : vector<64x64xbf16>, vector<64x64xbf16>, vector<64x64xf32> -> vector<64x64xf32>
    %c0_9 = arith.constant 0 : index
    %c0_10 = arith.constant 0 : index
    %10 = vector.load %arg5[%c0_9, %c0_10] : memref<1x64xf32, #tpu.memory_space<vmem>>, vector<1x64xf32>
    %11 = vector.broadcast %10 : vector<1x64xf32> to vector<64x64xf32>
    %12 = arith.addf %9, %11 : vector<64x64xf32>
    %13 = arith.addf %12, %6 : vector<64x64xf32>
    %cst_11 = arith.constant 0.000000e+00 : f32
    %14 = vector.broadcast %cst_11 : f32 to vector<64x64xf32>
    %15 = arith.maximumf %13, %14 : vector<64x64xf32>
    %cst_12 = arith.constant 0.000000e+00 : bf16
    %16 = vector.broadcast %cst_12 : bf16 to vector<16x64xbf16>
    %c0_13 = arith.constant 0 : index
    %c0_14 = arith.constant 0 : index
    %17 = vector.load %arg11[%c0_13, %c0_14] : memref<96x64xbf16, #tpu.memory_space<vmem>>, vector<16x64xbf16>
    tpu.vector_store %arg11[%c0_13, %c0_14], %16 {strides = array<i32>} : memref<96x64xbf16, #tpu.memory_space<vmem>>, vector<16x64xbf16>,
    %cst_15 = arith.constant 0.000000e+00 : bf16
    %18 = vector.broadcast %cst_15 : bf16 to vector<16x64xbf16>
    %c80 = arith.constant 80 : index
    %c0_16 = arith.constant 0 : index
    %19 = vector.load %arg11[%c80, %c0_16] : memref<96x64xbf16, #tpu.memory_space<vmem>>, vector<16x64xbf16>
    tpu.vector_store %arg11[%c80, %c0_16], %18 {strides = array<i32>} : memref<96x64xbf16, #tpu.memory_space<vmem>>, vector<16x64xbf16>,
    %20 = arith.truncf %15 : vector<64x64xf32> to vector<64x64xbf16>
    %c16 = arith.constant 16 : index
    %c0_17 = arith.constant 0 : index
    %21 = vector.load %arg11[%c16, %c0_17] : memref<96x64xbf16, #tpu.memory_space<vmem>>, vector<64x64xbf16>
    tpu.vector_store %arg11[%c16, %c0_17], %20 {strides = array<i32>} : memref<96x64xbf16, #tpu.memory_space<vmem>>, vector<64x64xbf16>,
    %22 = tpu.iota {dimensions = array<i32: 0>} : vector<64x1xi32>
    %c7_i32 = arith.constant 7 : i32
    %23 = vector.broadcast %c7_i32 : i32 to vector<64x1xi32>
    %24 = arith.andi %22, %23 : vector<64x1xi32>
    %c0_i32 = arith.constant 0 : i32
    %25 = vector.broadcast %c0_i32 : i32 to vector<64x1xi32>
    %26 = arith.cmpi ne, %24, %25 : vector<64x1xi32>
    %c7_i32_18 = arith.constant 7 : i32
    %27 = vector.broadcast %c7_i32_18 : i32 to vector<64x1xi32>
    %28 = arith.cmpi ne, %24, %27 : vector<64x1xi32>
    %c0_19 = arith.constant 0 : index
    %c0_20 = arith.constant 0 : index
    %29 = vector.load %arg7[%c0_19, %c0_20] : memref<1x64xf32, #tpu.memory_space<vmem>>, vector<1x64xf32>
    %30 = vector.broadcast %29 : vector<1x64xf32> to vector<64x64xf32>
    %31 = arith.addf %30, %15 : vector<64x64xf32>
    %c7 = arith.constant 7 : index
    %c0_21 = arith.constant 0 : index
    %32 = vector.load %arg11[%c7, %c0_21] : memref<96x64xbf16, #tpu.memory_space<vmem>>, vector<64x64xbf16>
    %cst_22 = arith.constant 0.000000e+00 : bf16
    %33 = vector.broadcast %cst_22 : bf16 to vector<64x64xbf16>
    %34 = vector.shape_cast %26 : vector<64x1xi1> to vector<64x1xi1>
    %35 = vector.broadcast %34 : vector<64x1xi1> to vector<64x64xi1>
    %36 = arith.select %35, %32, %33 : vector<64x64xi1>, vector<64x64xbf16>
    %c0_23 = arith.constant 0 : index
    %c0_24 = arith.constant 0 : index
    %c0_25 = arith.constant 0 : index
    %37 = vector.load %arg6[%c0_23, %c0_24, %c0_25] : memref<9x64x64xbf16, #tpu.memory_space<vmem>>, vector<1x64x64xbf16>
    %38 = vector.shape_cast %37 : vector<1x64x64xbf16> to vector<64x64xbf16>
    %cst_26 = arith.constant dense<0.000000e+00> : vector<64x64xf32>
    %39 = tpu.matmul %36, %38, %cst_26 {dimension_numbers = #tpu.dot_dimension_numbers<[1], [0], [0], [1], [0, 0, 1, 1], [], []>} : vector<64x64xbf16>, vector<64x64xbf16>, vector<64x64xf32> -> vector<64x64xf32>
    %40 = arith.addf %31, %39 : vector<64x64xf32>
    %c8 = arith.constant 8 : index
    %c0_27 = arith.constant 0 : index
    %41 = vector.load %arg11[%c8, %c0_27] : memref<96x64xbf16, #tpu.memory_space<vmem>>, vector<64x64xbf16>
    %c1 = arith.constant 1 : index
    %c0_28 = arith.constant 0 : index
    %c0_29 = arith.constant 0 : index
    %42 = vector.load %arg6[%c1, %c0_28, %c0_29] : memref<9x64x64xbf16, #tpu.memory_space<vmem>>, vector<1x64x64xbf16>
    %43 = vector.shape_cast %42 : vector<1x64x64xbf16> to vector<64x64xbf16>
    %cst_30 = arith.constant dense<0.000000e+00> : vector<64x64xf32>
    %44 = tpu.matmul %41, %43, %cst_30 {dimension_numbers = #tpu.dot_dimension_numbers<[1], [0], [0], [1], [0, 0, 1, 1], [], []>} : vector<64x64xbf16>, vector<64x64xbf16>, vector<64x64xf32> -> vector<64x64xf32>
    %45 = arith.addf %40, %44 : vector<64x64xf32>
    %c9 = arith.constant 9 : index
    %c0_31 = arith.constant 0 : index
    %46 = vector.load %arg11[%c9, %c0_31] : memref<96x64xbf16, #tpu.memory_space<vmem>>, vector<64x64xbf16>
    %cst_32 = arith.constant 0.000000e+00 : bf16
    %47 = vector.broadcast %cst_32 : bf16 to vector<64x64xbf16>
    %48 = vector.shape_cast %28 : vector<64x1xi1> to vector<64x1xi1>
    %49 = vector.broadcast %48 : vector<64x1xi1> to vector<64x64xi1>
    %50 = arith.select %49, %46, %47 : vector<64x64xi1>, vector<64x64xbf16>
    %c2 = arith.constant 2 : index
    %c0_33 = arith.constant 0 : index
    %c0_34 = arith.constant 0 : index
    %51 = vector.load %arg6[%c2, %c0_33, %c0_34] : memref<9x64x64xbf16, #tpu.memory_space<vmem>>, vector<1x64x64xbf16>
    %52 = vector.shape_cast %51 : vector<1x64x64xbf16> to vector<64x64xbf16>
    %cst_35 = arith.constant dense<0.000000e+00> : vector<64x64xf32>
    %53 = tpu.matmul %50, %52, %cst_35 {dimension_numbers = #tpu.dot_dimension_numbers<[1], [0], [0], [1], [0, 0, 1, 1], [], []>} : vector<64x64xbf16>, vector<64x64xbf16>, vector<64x64xf32> -> vector<64x64xf32>
    %54 = arith.addf %45, %53 : vector<64x64xf32>
    %c15 = arith.constant 15 : index
    %c0_36 = arith.constant 0 : index
    %55 = vector.load %arg11[%c15, %c0_36] : memref<96x64xbf16, #tpu.memory_space<vmem>>, vector<64x64xbf16>
    %cst_37 = arith.constant 0.000000e+00 : bf16
    %56 = vector.broadcast %cst_37 : bf16 to vector<64x64xbf16>
    %57 = vector.shape_cast %26 : vector<64x1xi1> to vector<64x1xi1>
    %58 = vector.broadcast %57 : vector<64x1xi1> to vector<64x64xi1>
    %59 = arith.select %58, %55, %56 : vector<64x64xi1>, vector<64x64xbf16>
    %c3 = arith.constant 3 : index
    %c0_38 = arith.constant 0 : index
    %c0_39 = arith.constant 0 : index
    %60 = vector.load %arg6[%c3, %c0_38, %c0_39] : memref<9x64x64xbf16, #tpu.memory_space<vmem>>, vector<1x64x64xbf16>
    %61 = vector.shape_cast %60 : vector<1x64x64xbf16> to vector<64x64xbf16>
    %cst_40 = arith.constant dense<0.000000e+00> : vector<64x64xf32>
    %62 = tpu.matmul %59, %61, %cst_40 {dimension_numbers = #tpu.dot_dimension_numbers<[1], [0], [0], [1], [0, 0, 1, 1], [], []>} : vector<64x64xbf16>, vector<64x64xbf16>, vector<64x64xf32> -> vector<64x64xf32>
    %63 = arith.addf %54, %62 : vector<64x64xf32>
    %c16_41 = arith.constant 16 : index
    %c0_42 = arith.constant 0 : index
    %64 = vector.load %arg11[%c16_41, %c0_42] : memref<96x64xbf16, #tpu.memory_space<vmem>>, vector<64x64xbf16>
    %c4 = arith.constant 4 : index
    %c0_43 = arith.constant 0 : index
    %c0_44 = arith.constant 0 : index
    %65 = vector.load %arg6[%c4, %c0_43, %c0_44] : memref<9x64x64xbf16, #tpu.memory_space<vmem>>, vector<1x64x64xbf16>
    %66 = vector.shape_cast %65 : vector<1x64x64xbf16> to vector<64x64xbf16>
    %cst_45 = arith.constant dense<0.000000e+00> : vector<64x64xf32>
    %67 = tpu.matmul %64, %66, %cst_45 {dimension_numbers = #tpu.dot_dimension_numbers<[1], [0], [0], [1], [0, 0, 1, 1], [], []>} : vector<64x64xbf16>, vector<64x64xbf16>, vector<64x64xf32> -> vector<64x64xf32>
    %68 = arith.addf %63, %67 : vector<64x64xf32>
    %c17 = arith.constant 17 : index
    %c0_46 = arith.constant 0 : index
    %69 = vector.load %arg11[%c17, %c0_46] : memref<96x64xbf16, #tpu.memory_space<vmem>>, vector<64x64xbf16>
    %cst_47 = arith.constant 0.000000e+00 : bf16
    %70 = vector.broadcast %cst_47 : bf16 to vector<64x64xbf16>
    %71 = vector.shape_cast %28 : vector<64x1xi1> to vector<64x1xi1>
    %72 = vector.broadcast %71 : vector<64x1xi1> to vector<64x64xi1>
    %73 = arith.select %72, %69, %70 : vector<64x64xi1>, vector<64x64xbf16>
    %c5 = arith.constant 5 : index
    %c0_48 = arith.constant 0 : index
    %c0_49 = arith.constant 0 : index
    %74 = vector.load %arg6[%c5, %c0_48, %c0_49] : memref<9x64x64xbf16, #tpu.memory_space<vmem>>, vector<1x64x64xbf16>
    %75 = vector.shape_cast %74 : vector<1x64x64xbf16> to vector<64x64xbf16>
    %cst_50 = arith.constant dense<0.000000e+00> : vector<64x64xf32>
    %76 = tpu.matmul %73, %75, %cst_50 {dimension_numbers = #tpu.dot_dimension_numbers<[1], [0], [0], [1], [0, 0, 1, 1], [], []>} : vector<64x64xbf16>, vector<64x64xbf16>, vector<64x64xf32> -> vector<64x64xf32>
    %77 = arith.addf %68, %76 : vector<64x64xf32>
    %c23 = arith.constant 23 : index
    %c0_51 = arith.constant 0 : index
    %78 = vector.load %arg11[%c23, %c0_51] : memref<96x64xbf16, #tpu.memory_space<vmem>>, vector<64x64xbf16>
    %cst_52 = arith.constant 0.000000e+00 : bf16
    %79 = vector.broadcast %cst_52 : bf16 to vector<64x64xbf16>
    %80 = vector.shape_cast %26 : vector<64x1xi1> to vector<64x1xi1>
    %81 = vector.broadcast %80 : vector<64x1xi1> to vector<64x64xi1>
    %82 = arith.select %81, %78, %79 : vector<64x64xi1>, vector<64x64xbf16>
    %c6 = arith.constant 6 : index
    %c0_53 = arith.constant 0 : index
    %c0_54 = arith.constant 0 : index
    %83 = vector.load %arg6[%c6, %c0_53, %c0_54] : memref<9x64x64xbf16, #tpu.memory_space<vmem>>, vector<1x64x64xbf16>
    %84 = vector.shape_cast %83 : vector<1x64x64xbf16> to vector<64x64xbf16>
    %cst_55 = arith.constant dense<0.000000e+00> : vector<64x64xf32>
    %85 = tpu.matmul %82, %84, %cst_55 {dimension_numbers = #tpu.dot_dimension_numbers<[1], [0], [0], [1], [0, 0, 1, 1], [], []>} : vector<64x64xbf16>, vector<64x64xbf16>, vector<64x64xf32> -> vector<64x64xf32>
    %86 = arith.addf %77, %85 : vector<64x64xf32>
    %c24 = arith.constant 24 : index
    %c0_56 = arith.constant 0 : index
    %87 = vector.load %arg11[%c24, %c0_56] : memref<96x64xbf16, #tpu.memory_space<vmem>>, vector<64x64xbf16>
    %c7_57 = arith.constant 7 : index
    %c0_58 = arith.constant 0 : index
    %c0_59 = arith.constant 0 : index
    %88 = vector.load %arg6[%c7_57, %c0_58, %c0_59] : memref<9x64x64xbf16, #tpu.memory_space<vmem>>, vector<1x64x64xbf16>
    %89 = vector.shape_cast %88 : vector<1x64x64xbf16> to vector<64x64xbf16>
    %cst_60 = arith.constant dense<0.000000e+00> : vector<64x64xf32>
    %90 = tpu.matmul %87, %89, %cst_60 {dimension_numbers = #tpu.dot_dimension_numbers<[1], [0], [0], [1], [0, 0, 1, 1], [], []>} : vector<64x64xbf16>, vector<64x64xbf16>, vector<64x64xf32> -> vector<64x64xf32>
    %91 = arith.addf %86, %90 : vector<64x64xf32>
    %c25 = arith.constant 25 : index
    %c0_61 = arith.constant 0 : index
    %92 = vector.load %arg11[%c25, %c0_61] : memref<96x64xbf16, #tpu.memory_space<vmem>>, vector<64x64xbf16>
    %cst_62 = arith.constant 0.000000e+00 : bf16
    %93 = vector.broadcast %cst_62 : bf16 to vector<64x64xbf16>
    %94 = vector.shape_cast %28 : vector<64x1xi1> to vector<64x1xi1>
    %95 = vector.broadcast %94 : vector<64x1xi1> to vector<64x64xi1>
    %96 = arith.select %95, %92, %93 : vector<64x64xi1>, vector<64x64xbf16>
    %c8_63 = arith.constant 8 : index
    %c0_64 = arith.constant 0 : index
    %c0_65 = arith.constant 0 : index
    %97 = vector.load %arg6[%c8_63, %c0_64, %c0_65] : memref<9x64x64xbf16, #tpu.memory_space<vmem>>, vector<1x64x64xbf16>
    %98 = vector.shape_cast %97 : vector<1x64x64xbf16> to vector<64x64xbf16>
    %cst_66 = arith.constant dense<0.000000e+00> : vector<64x64xf32>
    %99 = tpu.matmul %96, %98, %cst_66 {dimension_numbers = #tpu.dot_dimension_numbers<[1], [0], [0], [1], [0, 0, 1, 1], [], []>} : vector<64x64xbf16>, vector<64x64xbf16>, vector<64x64xf32> -> vector<64x64xf32>
    %100 = arith.addf %91, %99 : vector<64x64xf32>
    %cst_67 = arith.constant 0.000000e+00 : f32
    %101 = vector.broadcast %cst_67 : f32 to vector<64x64xf32>
    %102 = arith.maximumf %100, %101 : vector<64x64xf32>
    %103 = arith.truncf %102 : vector<64x64xf32> to vector<64x64xbf16>
    %c0_68 = arith.constant 0 : index
    %c0_69 = arith.constant 0 : index
    %104 = vector.load %arg8[%c0_68, %c0_69] : memref<64x48xbf16, #tpu.memory_space<vmem>>, vector<64x48xbf16>
    %cst_70 = arith.constant dense<0.000000e+00> : vector<64x48xf32>
    %105 = tpu.matmul %103, %104, %cst_70 {dimension_numbers = #tpu.dot_dimension_numbers<[1], [0], [0], [1], [0, 0, 1, 1], [], []>} : vector<64x64xbf16>, vector<64x48xbf16>, vector<64x48xf32> -> vector<64x48xf32>
    %c0_71 = arith.constant 0 : index
    %c0_72 = arith.constant 0 : index
    %106 = vector.load %arg9[%c0_71, %c0_72] : memref<1x48xf32, #tpu.memory_space<vmem>>, vector<1x48xf32>
    %107 = vector.broadcast %106 : vector<1x48xf32> to vector<64x48xf32>
    %108 = arith.addf %105, %107 : vector<64x48xf32>
    %109 = arith.truncf %108 : vector<64x48xf32> to vector<64x48xbf16>
    %c0_73 = arith.constant 0 : index
    %c0_74 = arith.constant 0 : index
    %c0_75 = arith.constant 0 : index
    %110 = vector.load %arg10[%c0_73, %c0_74, %c0_75] : memref<1x64x48xbf16, #tpu.memory_space<vmem>>, vector<1x64x48xbf16>
    %111 = vector.shape_cast %110 : vector<1x64x48xbf16> to vector<64x48xbf16>
    %112 = vector.shape_cast %109 : vector<64x48xbf16> to vector<1x64x48xbf16>
    tpu.vector_store %arg10[%c0_73, %c0_74, %c0_75], %112 {strides = array<i32>} : memref<1x64x48xbf16, #tpu.memory_space<vmem>>, vector<1x64x48xbf16>,
    return
  }
  func.func @transform_0(%arg0: i32) -> (i32, i32, i32) {
    %c0_i32 = arith.constant 0 : i32
    %c0_i32_0 = arith.constant 0 : i32
    %c0_i32_1 = arith.constant 0 : i32
    return %arg0, %c0_i32, %c0_i32_0 : i32, i32, i32
  }
  func.func @transform_1(%arg0: i32) -> (i32, i32) {
    %c0_i32 = arith.constant 0 : i32
    %c0_i32_0 = arith.constant 0 : i32
    %c0_i32_1 = arith.constant 0 : i32
    return %c0_i32, %c0_i32_0 : i32, i32
  }
  func.func @transform_2(%arg0: i32) -> (i32, i32) {
    %c0_i32 = arith.constant 0 : i32
    %c0_i32_0 = arith.constant 0 : i32
    %c0_i32_1 = arith.constant 0 : i32
    return %c0_i32, %c0_i32_0 : i32, i32
  }
  func.func @transform_3(%arg0: i32) -> (i32, i32) {
    %c0_i32 = arith.constant 0 : i32
    %c0_i32_0 = arith.constant 0 : i32
    %c0_i32_1 = arith.constant 0 : i32
    return %c0_i32, %c0_i32_0 : i32, i32
  }
  func.func @transform_4(%arg0: i32) -> (i32, i32) {
    %c0_i32 = arith.constant 0 : i32
    %c0_i32_0 = arith.constant 0 : i32
    %c0_i32_1 = arith.constant 0 : i32
    return %c0_i32, %c0_i32_0 : i32, i32
  }
  func.func @transform_5(%arg0: i32) -> (i32, i32, i32) {
    %c0_i32 = arith.constant 0 : i32
    %c0_i32_0 = arith.constant 0 : i32
    %c0_i32_1 = arith.constant 0 : i32
    %c0_i32_2 = arith.constant 0 : i32
    return %c0_i32, %c0_i32_0, %c0_i32_1 : i32, i32, i32
  }
  func.func @transform_6(%arg0: i32) -> (i32, i32) {
    %c0_i32 = arith.constant 0 : i32
    %c0_i32_0 = arith.constant 0 : i32
    %c0_i32_1 = arith.constant 0 : i32
    return %c0_i32, %c0_i32_0 : i32, i32
  }
  func.func @transform_7(%arg0: i32) -> (i32, i32) {
    %c0_i32 = arith.constant 0 : i32
    %c0_i32_0 = arith.constant 0 : i32
    %c0_i32_1 = arith.constant 0 : i32
    return %c0_i32, %c0_i32_0 : i32, i32
  }
  func.func @transform_8(%arg0: i32) -> (i32, i32) {
    %c0_i32 = arith.constant 0 : i32
    %c0_i32_0 = arith.constant 0 : i32
    %c0_i32_1 = arith.constant 0 : i32
    return %c0_i32, %c0_i32_0 : i32, i32
  }
  func.func @transform_9(%arg0: i32) -> (i32, i32, i32) {
    %c0_i32 = arith.constant 0 : i32
    %c0_i32_0 = arith.constant 0 : i32
    %c0_i32_1 = arith.constant 0 : i32
    return %arg0, %c0_i32, %c0_i32_0 : i32, i32, i32
  }
}

</mosaic_0001>

<llo_original>
// kernel: tile.13
$region0: #{tile.13}
  #allocation2 [shape = 's32[1]{0}', space=sflag, size = 0x4, scoped, tag = 'scoped memory for tile.13']
  %s0 = inlined_call_operand.hbm [shape: f32[3], index: 0, kind: input, shape index: {}]
  %s1 = inlined_call_operand.vmem [shape: f32[4,3], index: 1, kind: output, shape index: {}]
  $region1: #{tile.13} parent=0
    #allocation0 [shape = 'u8[512]{0}', space=vmem, size = 0x400, scoped, tag = 'operand span for operand 0']
    #allocation1 [shape = 's32[1]{0}', space=sflag, size = 0x4, scoped, tag = 'scoped memory for tile.13']
    %2 = vsyncpa [#allocation1], 0
    // Predicated region
    $region2: #{tile.13} parent=1 // pred_check
      _
    $region3: #{tile.13} parent=1 // pred_check_branch
      %4 = sbr.rel (0) target = $region5
    $region4: #{tile.13} parent=1 // pred_region
      %s6 = ssub.s32 16, 16
      %7 = vsyncadd [#allocation1], %s6
      %s9 = sshll.u32 [#allocation0], 4
      %s10 = int_to_ptr.vmem [resolvable:$true] %s9
      %12 = dma.hbm_to_vmem [thread:$0]  %s0, 16, %s10, [#allocation1]
    $region5: #{tile.13} parent=1 // pred_fallthru
      _
    // Predicated region
    $region6: #{tile.13} parent=1 // pred_check
      _
    $region7: #{tile.13} parent=1 // pred_check_branch
      %14 = sbr.rel (0) target = $region9
    $region8: #{tile.13} parent=1 // pred_region
      %15 = dma.done [#allocation1], 16
    $region9: #{tile.13} parent=1 // pred_fallthru
      _
    %v16 = vld [vmem:[#allocation0] ss:$0 sm:$0xff]
    %17 = vst [vmem:[%s1] sm:$0xf] %v16
    %18 = vsyncpa [#allocation1], 1

// kernel: tile.18
$region0: #{tile.18}
  #allocation0 [shape = 's32[1]{0}', space=sflag, size = 0x4, scoped, tag = 'scoped memory for tile.18']
  %s0 = inlined_call_operand.vmem [shape: f32[12], index: 0, kind: input, shape index: {}]
  %s1 = inlined_call_operand.vmem [shape: f32[4,12], index: 1, kind: output, shape index: {}]
  // Predicated region
  $region2: #{tile.18} parent=0 // pred_check
    _
  $region3: #{tile.18} parent=0 // pred_check_branch
    %3 = sbr.rel (0) target = $region5
  $region4: #{tile.18} parent=0 // pred_region
    _
  $region5: #{tile.18} parent=0 // pred_fallthru
    _
  %v4 = vld [vmem:[%s0] ss:$0 sm:$0xff]
  %5 = vst [vmem:[%s1] sm:$0xf] %v4

// kernel: tile.19
$region0: #{tile.19}
  %s0 = inlined_call_operand.vmem [shape: f32[4,12], index: 0, kind: input, shape index: {}]
  %s1 = inlined_call_operand.vmem [shape: f32[1,48], index: 1, kind: output, shape index: {}]
  $region1: #{tile.19} parent=0
    #allocation0 [shape = 'u8[4096]{0}', space=vmem, size = 0x1000, scoped, tag = 'scoped mem for output reshape']
    #allocation1 [shape = 'u8[4096]{0}', space=vmem, size = 0x1000, scoped, tag = 'scoped mem for input reshape']
    %s3 = sshllo.u32 0, 4
    %v4 = vld [vmem:[%s0] sm:%s3]
    %5 = vst [vmem:[#allocation1] sm:%s3] %v4
    %v6 = vld [vmem:[#allocation1] sm:$0x1]
    %vm7 = vcmask 97280
    %8 = vst.msk [vmem:[#allocation0] sm:$0x1] %vm7, %v6
    %s9 = scalar_lea.vmem [#allocation1], 3
    %v10 = vld [vmem:[%s9] sm:$0x1]
    %11 = vrot.lane.b32.xlu0 %v10, 36
    %v12 = vpop.permute.xlu0 %11
    %vm13 = vcmask 392480
    %14 = vst.msk [vmem:[#allocation0] sm:$0x1] %vm13, %v12
    %s15 = scalar_lea.vmem [#allocation1], 2
    %v16 = vld [vmem:[%s15] sm:$0x1]
    %17 = vrot.lane.b32.xlu0 %v16, 24
    %v18 = vpop.permute.xlu0 %17
    %vm19 = vcmask 294080
    %20 = vst.msk [vmem:[#allocation0] sm:$0x1] %vm19, %v18
    %s21 = scalar_lea.vmem [#allocation1], 1
    %v22 = vld [vmem:[%s21] sm:$0x1]
    %23 = vrot.lane.b32.xlu0 %v22, 12
    %v24 = vpop.permute.xlu0 %23
    %vm25 = vcmask 195680
    %26 = vst.msk [vmem:[#allocation0] sm:$0x1] %vm25, %v24
    %s28 = sshllo.u32 0, 1
    %v30 = vld [vmem:[#allocation0] sm:%s28]
    %s31 = sshllo.u32 0, 1
    %32 = vst [vmem:[%s1] sm:%s31] %v30

// kernel: decoder_forward.1
$region0: #{decoder_forward.1}
  #allocation0 [shape = 'u32[]', space=smem, size = 0x4, offset = 0x4, fixed_abs, tag = 'smem constant byte address 0x4 - core index']
  #allocation1 [shape = 'u32[144,128]{1,0:T(1,128)}', space=vmem, size = 0x12000, scoped, tag = 'internal scratch']
  #allocation2 [shape = 'bf16[96,64]{1,0:T(16,128)(2,1)}', space=vmem, size = 0x6000, scoped, tag = 'scratch operand']
  %s0 = inlined_call_operand.vmem [shape: bf16[2,64,8], index: 0, kind: input, shape index: {}]
  %s1 = inlined_call_operand.vmem [shape: bf16[8,64], index: 1, kind: input, shape index: {}]
  %s2 = inlined_call_operand.hbm [shape: f32[1,64], index: 2, kind: input, shape index: {}]
  %s3 = inlined_call_operand.vmem [shape: bf16[64,64], index: 3, kind: input, shape index: {}]
  %s4 = inlined_call_operand.hbm [shape: f32[1,64], index: 4, kind: input, shape index: {}]
  %s5 = inlined_call_operand.vmem [shape: bf16[9,64,64], index: 5, kind: input, shape index: {}]
  %s6 = inlined_call_operand.hbm [shape: f32[1,64], index: 6, kind: input, shape index: {}]
  %s7 = inlined_call_operand.vmem [shape: bf16[64,48], index: 7, kind: input, shape index: {}]
  %s8 = inlined_call_operand.vmem [shape: f32[1,48], index: 8, kind: input, shape index: {}]
  %s9 = inlined_call_operand.vmem [shape: bf16[2,64,48], index: 9, kind: output, shape index: {}]
  %s10 = sld [smem:[#allocation0]]
  $region81: #{decoder_forward.1} parent=0
    _
  %s12 = ssub.s32 1, %s10
  %s13 = scalar_select 0, %s12, %s10
  $region1: #{decoder_forward.1} parent=0
    #allocation3 [shape = 'u8[512]{0}', space=vmem, size = 0x400, scoped, tag = 'input window, operand 2, single buffered']
    #allocation4 [shape = 's32[2]{0}', space=sflag, size = 0x8, scoped, tag = 'scoped memory for decoder_forward.1']
    #allocation5 [shape = 'u8[512]{0}', space=vmem, size = 0x400, scoped, tag = 'input window, operand 4, single buffered']
    #allocation6 [shape = 's32[1]{0}', space=sflag, size = 0x4, scoped, tag = 'scoped memory for decoder_forward.1']
    #allocation7 [shape = 'u8[512]{0}', space=vmem, size = 0x400, scoped, tag = 'input window, operand 6, single buffered']
    %14 = vsyncpa [#allocation4], 0
    %15 = vsyncpa [#allocation6], 0
    loop: start=0, step=1, limit=4
    $region2: #{decoder_forward.1} parent=1 // loop_pre_header
      _
    $region3: #{decoder_forward.1} parent=1 // loop_header
      %s17 = sphi 0, %s21
      %p18 = scmp.ge.s32.totalorder %s17, 4
      %s27 = sphi 0, %s29
      %s30 = sphi 0, %s27
      %s31 = sphi 0, %s30
      %s47 = sphi 0, %s31
      %s51 = sphi 0, %s51
      %s53 = sphi 0, %s51
      %s54 = sphi 0, %s53
      %s68 = sphi 0, %s54
      %s72 = sphi 0, %s72
      %s74 = sphi 0, %s72
      %s75 = sphi 0, %s74
      %s89 = sphi 0, %s75
      %s93 = sphi 0, %s93
      %s95 = sphi 0, %s93
      %s96 = sphi 0, %s95
      %s110 = sphi 0, %s96
      %s114 = sphi 0, %s114
      %s116 = sphi 0, %s114
      %s117 = sphi 0, %s116
      %s131 = sphi 0, %s117
      %s135 = sphi 0, %s135
      %s137 = sphi 0, %s135
      %s138 = sphi 0, %s137
      %s152 = sphi 0, %s138
      %s156 = sphi 0, %s156
      %s158 = sphi 0, %s156
      %s159 = sphi 0, %s158
      %s173 = sphi 0, %s159
      %s177 = sphi 0, %s177
      %s179 = sphi 0, %s177
      %s180 = sphi 0, %s179
      %s194 = sphi 0, %s180
      %s198 = sphi 0, %s198
      %s200 = sphi 0, %s198
      %s201 = sphi 0, %s200
      %s215 = sphi 0, %s201
      %s221 = sphi 0, %s223
      %s224 = sphi 0, %s221
      %s225 = sphi 0, %s224
      %s241 = sphi 0, %s225
    $region4: #{decoder_forward.1} parent=1 // loop_header_branch
      %20 = sbr.rel (%p18) target = $region8
    $region5: #{decoder_forward.1} parent=1 // loop_body
      %s22 = ssub.s32 %s17, 1
      %s23 = ssub.s32 %s17, 2
      %s24 = sadd.s32 %s17, 1
      %s25 = ssub.s32 %s17, %s24
      %p26 = scmp.eq.s32.totalorder %s25, 0
      %s28 = sadd.s32 %s27, 1
      %s29 = scalar_select %p26, %s27, %s28
      %p32 = pneg %p26
      %p33 = scmp.eq.s32.totalorder %s17, 1
      %p34 = por %p32, %p33
      %p35 = scmp.ne.s32.totalorder %s27, %s30
      %p36 = scmp.eq.s32.totalorder %s17, 0
      %p37 = por %p35, %p36
      %p38 = scmp.ne.s32.totalorder %s27, %s30
      %p39 = scmp.eq.s32.totalorder %s22, 1
      %p40 = por %p38, %p39
      %p41 = scmp.ne.s32.totalorder %s30, %s31
      %p42 = scmp.eq.s32.totalorder %s22, 0
      %p43 = por %p41, %p42
      %p44 = scmp.ne.s32.totalorder %s30, %s31
      %p45 = scmp.eq.s32.totalorder %s23, 1
      %p46 = por %p44, %p45
      %p48 = scmp.ne.s32.totalorder %s31, %s47
      %p49 = scmp.eq.s32.totalorder %s23, 0
      %p50 = por %p48, %p49
      %s52 = sadd.s32 %s51, 1
      %p55 = scmp.eq.s32.totalorder %s17, 1
      %p56 = scmp.ne.s32.totalorder %s51, %s53
      %p57 = scmp.eq.s32.totalorder %s17, 0
      %p58 = por %p56, %p57
      %p59 = scmp.ne.s32.totalorder %s51, %s53
      %p60 = scmp.eq.s32.totalorder %s22, 1
      %p61 = por %p59, %p60
      %p62 = scmp.ne.s32.totalorder %s53, %s54
      %p63 = scmp.eq.s32.totalorder %s22, 0
      %p64 = por %p62, %p63
      %p65 = scmp.ne.s32.totalorder %s53, %s54
      %p66 = scmp.eq.s32.totalorder %s23, 1
      %p67 = por %p65, %p66
      %p69 = scmp.ne.s32.totalorder %s54, %s68
      %p70 = scmp.eq.s32.totalorder %s23, 0
      %p71 = por %p69, %p70
      %s73 = sadd.s32 %s72, 1
      %p76 = scmp.eq.s32.totalorder %s17, 1
      %p77 = scmp.ne.s32.totalorder %s72, %s74
      %p78 = scmp.eq.s32.totalorder %s17, 0
      %p79 = por %p77, %p78
      %p80 = scmp.ne.s32.totalorder %s72, %s74
      %p81 = scmp.eq.s32.totalorder %s22, 1
      %p82 = por %p80, %p81
      %p83 = scmp.ne.s32.totalorder %s74, %s75
      %p84 = scmp.eq.s32.totalorder %s22, 0
      %p85 = por %p83, %p84
      %p86 = scmp.ne.s32.totalorder %s74, %s75
      %p87 = scmp.eq.s32.totalorder %s23, 1
      %p88 = por %p86, %p87
      %p90 = scmp.ne.s32.totalorder %s75, %s89
      %p91 = scmp.eq.s32.totalorder %s23, 0
      %p92 = por %p90, %p91
      %s94 = sadd.s32 %s93, 1
      %p97 = scmp.eq.s32.totalorder %s17, 1
      %p98 = scmp.ne.s32.totalorder %s93, %s95
      %p99 = scmp.eq.s32.totalorder %s17, 0
      %p100 = por %p98, %p99
      %p101 = scmp.ne.s32.totalorder %s93, %s95
      %p102 = scmp.eq.s32.totalorder %s22, 1
      %p103 = por %p101, %p102
      %p104 = scmp.ne.s32.totalorder %s95, %s96
      %p105 = scmp.eq.s32.totalorder %s22, 0
      %p106 = por %p104, %p105
      %p107 = scmp.ne.s32.totalorder %s95, %s96
      %p108 = scmp.eq.s32.totalorder %s23, 1
      %p109 = por %p107, %p108
      %p111 = scmp.ne.s32.totalorder %s96, %s110
      %p112 = scmp.eq.s32.totalorder %s23, 0
      %p113 = por %p111, %p112
      %s115 = sadd.s32 %s114, 1
      %p118 = scmp.eq.s32.totalorder %s17, 1
      %p119 = scmp.ne.s32.totalorder %s114, %s116
      %p120 = scmp.eq.s32.totalorder %s17, 0
      %p121 = por %p119, %p120
      %p122 = scmp.ne.s32.totalorder %s114, %s116
      %p123 = scmp.eq.s32.totalorder %s22, 1
      %p124 = por %p122, %p123
      %p125 = scmp.ne.s32.totalorder %s116, %s117
      %p126 = scmp.eq.s32.totalorder %s22, 0
      %p127 = por %p125, %p126
      %p128 = scmp.ne.s32.totalorder %s116, %s117
      %p129 = scmp.eq.s32.totalorder %s23, 1
      %p130 = por %p128, %p129
      %p132 = scmp.ne.s32.totalorder %s117, %s131
      %p133 = scmp.eq.s32.totalorder %s23, 0
      %p134 = por %p132, %p133
      %s136 = sadd.s32 %s135, 1
      %p139 = scmp.eq.s32.totalorder %s17, 1
      %p140 = scmp.ne.s32.totalorder %s135, %s137
      %p141 = scmp.eq.s32.totalorder %s17, 0
      %p142 = por %p140, %p141
      %p143 = scmp.ne.s32.totalorder %s135, %s137
      %p144 = scmp.eq.s32.totalorder %s22, 1
      %p145 = por %p143, %p144
      %p146 = scmp.ne.s32.totalorder %s137, %s138
      %p147 = scmp.eq.s32.totalorder %s22, 0
      %p148 = por %p146, %p147
      %p149 = scmp.ne.s32.totalorder %s137, %s138
      %p150 = scmp.eq.s32.totalorder %s23, 1
      %p151 = por %p149, %p150
      %p153 = scmp.ne.s32.totalorder %s138, %s152
      %p154 = scmp.eq.s32.totalorder %s23, 0
      %p155 = por %p153, %p154
      %s157 = sadd.s32 %s156, 1
      %p160 = scmp.eq.s32.totalorder %s17, 1
      %p161 = scmp.ne.s32.totalorder %s156, %s158
      %p162 = scmp.eq.s32.totalorder %s17, 0
      %p163 = por %p161, %p162
      %p164 = scmp.ne.s32.totalorder %s156, %s158
      %p165 = scmp.eq.s32.totalorder %s22, 1
      %p166 = por %p164, %p165
      %p167 = scmp.ne.s32.totalorder %s158, %s159
      %p168 = scmp.eq.s32.totalorder %s22, 0
      %p169 = por %p167, %p168
      %p170 = scmp.ne.s32.totalorder %s158, %s159
      %p171 = scmp.eq.s32.totalorder %s23, 1
      %p172 = por %p170, %p171
      %p174 = scmp.ne.s32.totalorder %s159, %s173
      %p175 = scmp.eq.s32.totalorder %s23, 0
      %p176 = por %p174, %p175
      %s178 = sadd.s32 %s177, 1
      %p181 = scmp.eq.s32.totalorder %s17, 1
      %p182 = scmp.ne.s32.totalorder %s177, %s179
      %p183 = scmp.eq.s32.totalorder %s17, 0
      %p184 = por %p182, %p183
      %p185 = scmp.ne.s32.totalorder %s177, %s179
      %p186 = scmp.eq.s32.totalorder %s22, 1
      %p187 = por %p185, %p186
      %p188 = scmp.ne.s32.totalorder %s179, %s180
      %p189 = scmp.eq.s32.totalorder %s22, 0
      %p190 = por %p188, %p189
      %p191 = scmp.ne.s32.totalorder %s179, %s180
      %p192 = scmp.eq.s32.totalorder %s23, 1
      %p193 = por %p191, %p192
      %p195 = scmp.ne.s32.totalorder %s180, %s194
      %p196 = scmp.eq.s32.totalorder %s23, 0
      %p197 = por %p195, %p196
      %s199 = sadd.s32 %s198, 1
      %p202 = scmp.eq.s32.totalorder %s17, 1
      %p203 = scmp.ne.s32.totalorder %s198, %s200
      %p204 = scmp.eq.s32.totalorder %s17, 0
      %p205 = por %p203, %p204
      %p206 = scmp.ne.s32.totalorder %s198, %s200
      %p207 = scmp.eq.s32.totalorder %s22, 1
      %p208 = por %p206, %p207
      %p209 = scmp.ne.s32.totalorder %s200, %s201
      %p210 = scmp.eq.s32.totalorder %s22, 0
      %p211 = por %p209, %p210
      %p212 = scmp.ne.s32.totalorder %s200, %s201
      %p213 = scmp.eq.s32.totalorder %s23, 1
      %p214 = por %p212, %p213
      %p216 = scmp.ne.s32.totalorder %s201, %s215
      %p217 = scmp.eq.s32.totalorder %s23, 0
      %p218 = por %p216, %p217
      %s219 = ssub.s32 %s17, %s24
      %p220 = scmp.eq.s32.totalorder %s219, 0
      %s222 = sadd.s32 %s221, 1
      %s223 = scalar_select %p220, %s221, %s222
      %p226 = pneg %p220
      %p227 = scmp.eq.s32.totalorder %s17, 1
      %p228 = por %p226, %p227
      %p229 = scmp.ne.s32.totalorder %s221, %s224
      %p230 = scmp.eq.s32.totalorder %s17, 0
      %p231 = por %p229, %p230
      %p232 = scmp.ne.s32.totalorder %s221, %s224
      %p233 = scmp.eq.s32.totalorder %s22, 1
      %p234 = por %p232, %p233
      %p235 = scmp.ne.s32.totalorder %s224, %s225
      %p236 = scmp.eq.s32.totalorder %s22, 0
      %p237 = por %p235, %p236
      %p238 = scmp.ne.s32.totalorder %s224, %s225
      %p239 = scmp.eq.s32.totalorder %s23, 1
      %p240 = por %p238, %p239
      %p242 = scmp.ne.s32.totalorder %s225, %s241
      %p243 = scmp.eq.s32.totalorder %s23, 0
      %p244 = por %p242, %p243
      %p245 = scmp.le.s32.totalorder 1, %s17
      %p246 = scmp.lt.s32.totalorder %s17, 3
      %p247 = pnand %p245, %p246
      %p248 = pneg %p247
      // Predicated region
      $region9: #{decoder_forward.1} parent=5 // pred_check
        _
      $region10: #{decoder_forward.1} parent=5 // pred_check_branch
        %250 = sbr.rel (%p247) target = $region12
      $region11: #{decoder_forward.1} parent=5 // pred_region
        %s251 = ssub.s32 %s17, 1
        // Predicated region
        $region13: #{decoder_forward.1} parent=11 // pred_check
          %p252 = pneg %p64
        $region14: #{decoder_forward.1} parent=11 // pred_check_branch
          %254 = sbr.rel (%p252) target = $region16
        $region15: #{decoder_forward.1} parent=11 // pred_region
          _
        $region16: #{decoder_forward.1} parent=11 // pred_fallthru
          _
        // Predicated region
        $region17: #{decoder_forward.1} parent=11 // pred_check
          %p255 = pneg %p85
        $region18: #{decoder_forward.1} parent=11 // pred_check_branch
          %257 = sbr.rel (%p255) target = $region20
        $region19: #{decoder_forward.1} parent=11 // pred_region
          %s259 = ssub.s32 16, 16
          %260 = vsyncadd [#allocation4], %s259
          %s262 = sshll.u32 [#allocation3], 4
          %s263 = int_to_ptr.vmem [resolvable:$true] %s262
          %265 = dma.hbm_to_vmem [thread:$0]  %s2, 16, %s263, [#allocation4]
        $region20: #{decoder_forward.1} parent=11 // pred_fallthru
          _
        // Predicated region
        $region21: #{decoder_forward.1} parent=11 // pred_check
          %p266 = pneg %p106
        $region22: #{decoder_forward.1} parent=11 // pred_check_branch
          %268 = sbr.rel (%p266) target = $region24
        $region23: #{decoder_forward.1} parent=11 // pred_region
          _
        $region24: #{decoder_forward.1} parent=11 // pred_fallthru
          _
        // Predicated region
        $region25: #{decoder_forward.1} parent=11 // pred_check
          %p269 = pneg %p127
        $region26: #{decoder_forward.1} parent=11 // pred_check_branch
          %271 = sbr.rel (%p269) target = $region28
        $region27: #{decoder_forward.1} parent=11 // pred_region
          %s273 = ssub.s32 16, 16
          %274 = vsyncadd [#allocation6], %s273
          %s276 = sshll.u32 [#allocation5], 4
          %s277 = int_to_ptr.vmem [resolvable:$true] %s276
          %279 = dma.hbm_to_vmem [thread:$0]  %s4, 16, %s277, [#allocation6]
        $region28: #{decoder_forward.1} parent=11 // pred_fallthru
          _
        // Predicated region
        $region29: #{decoder_forward.1} parent=11 // pred_check
          %p280 = pneg %p148
        $region30: #{decoder_forward.1} parent=11 // pred_check_branch
          %282 = sbr.rel (%p280) target = $region32
        $region31: #{decoder_forward.1} parent=11 // pred_region
          _
        $region32: #{decoder_forward.1} parent=11 // pred_fallthru
          _
        // Predicated region
        $region33: #{decoder_forward.1} parent=11 // pred_check
          %p283 = pneg %p169
        $region34: #{decoder_forward.1} parent=11 // pred_check_branch
          %285 = sbr.rel (%p283) target = $region36
        $region35: #{decoder_forward.1} parent=11 // pred_region
          %s287 = ssub.s32 16, 16
          %288 = vsyncadd [#allocation6], %s287
          %s290 = sshll.u32 [#allocation7], 4
          %s291 = int_to_ptr.vmem [resolvable:$true] %s290
          %293 = dma.hbm_to_vmem [thread:$0]  %s6, 16, %s291, [#allocation6]
        $region36: #{decoder_forward.1} parent=11 // pred_fallthru
          _
        // Predicated region
        $region37: #{decoder_forward.1} parent=11 // pred_check
          %p294 = pneg %p190
        $region38: #{decoder_forward.1} parent=11 // pred_check_branch
          %296 = sbr.rel (%p294) target = $region40
        $region39: #{decoder_forward.1} parent=11 // pred_region
          _
        $region40: #{decoder_forward.1} parent=11 // pred_fallthru
          _
        // Predicated region
        $region41: #{decoder_forward.1} parent=11 // pred_check
          %p297 = pneg %p211
        $region42: #{decoder_forward.1} parent=11 // pred_check_branch
          %299 = sbr.rel (%p297) target = $region44
        $region43: #{decoder_forward.1} parent=11 // pred_region
          _
        $region44: #{decoder_forward.1} parent=11 // pred_fallthru
          _
      $region12: #{decoder_forward.1} parent=5 // pred_fallthru
        _
      %p300 = scmp.lt.s32.totalorder %s17, 2
      // Predicated region
      $region45: #{decoder_forward.1} parent=5 // pred_check
        %p301 = pneg %p300
      $region46: #{decoder_forward.1} parent=5 // pred_check_branch
        %303 = sbr.rel (%p301) target = $region48
      $region47: #{decoder_forward.1} parent=5 // pred_region
        // Predicated region
        $region49: #{decoder_forward.1} parent=47 // pred_check
          %p304 = pneg %p37
        $region50: #{decoder_forward.1} parent=47 // pred_check_branch
          %306 = sbr.rel (%p304) target = $region52
        $region51: #{decoder_forward.1} parent=47 // pred_region
          %p307 = scmp.lt.s32.totalorder %s17, 1
          %s308 = scalar_select %p307, %s17, 1
          %s309 = smul.addr %s308, 8
          %s310 = smul.addr %s309, 4
          %s311 = scalar_lea.vmem %s0, %s310
        $region52: #{decoder_forward.1} parent=47 // pred_fallthru
          _
      $region48: #{decoder_forward.1} parent=5 // pred_fallthru
        _
      %p312 = scmp.le.s32.totalorder 1, %s17
      %p313 = scmp.lt.s32.totalorder %s17, 3
      %p314 = pnand %p312, %p313
      %p315 = pneg %p314
      // Predicated region
      $region53: #{decoder_forward.1} parent=5 // pred_check
        _
      $region54: #{decoder_forward.1} parent=5 // pred_check_branch
        %317 = sbr.rel (%p314) target = $region56
      $region55: #{decoder_forward.1} parent=5 // pred_region
        %s318 = ssub.s32 %s17, 1
        // Predicated region
        $region57: #{decoder_forward.1} parent=55 // pred_check
          %p319 = pneg %p85
        $region58: #{decoder_forward.1} parent=55 // pred_check_branch
          %321 = sbr.rel (%p319) target = $region60
        $region59: #{decoder_forward.1} parent=55 // pred_region
          %322 = dma.done [#allocation4], 16
        $region60: #{decoder_forward.1} parent=55 // pred_fallthru
          _
        // Predicated region
        $region61: #{decoder_forward.1} parent=55 // pred_check
          %p323 = pneg %p127
        $region62: #{decoder_forward.1} parent=55 // pred_check_branch
          %325 = sbr.rel (%p323) target = $region64
        $region63: #{decoder_forward.1} parent=55 // pred_region
          %326 = dma.done [#allocation6], 16
        $region64: #{decoder_forward.1} parent=55 // pred_fallthru
          _
        // Predicated region
        $region65: #{decoder_forward.1} parent=55 // pred_check
          %p327 = pneg %p169
        $region66: #{decoder_forward.1} parent=55 // pred_check_branch
          %329 = sbr.rel (%p327) target = $region68
        $region67: #{decoder_forward.1} parent=55 // pred_region
          %330 = dma.done [#allocation6], 16
        $region68: #{decoder_forward.1} parent=55 // pred_fallthru
          _
        %p331 = scmp.lt.s32.totalorder %s22, 1
        %s332 = scalar_select %p331, %s22, 1
        %s333 = smul.addr %s332, 8
        %s334 = smul.addr %s333, 4
        %s335 = scalar_lea.vmem %s0, %s334
        %p336 = pneg %p43
        %p337 = pneg %p40
        %p338 = pneg %p64
        %p339 = pneg %p61
        %p340 = pneg %p85
        %p341 = pneg %p82
        %p342 = pneg %p106
        %p343 = pneg %p103
        %p344 = pneg %p127
        %p345 = pneg %p124
        %p346 = pneg %p148
        %p347 = pneg %p145
        %p348 = pneg %p169
        %p349 = pneg %p166
        %p350 = pneg %p190
        %p351 = pneg %p187
        %p352 = pneg %p211
        %p353 = pneg %p208
        %p354 = pneg %p237
        %p355 = pneg %p234
        %p356 = scmp.lt.s32.totalorder %s22, 1
        %s357 = scalar_select %p356, %s22, 1
        %s358 = smul.addr %s357, 8
        %s359 = smul.addr %s358, 4
        %s360 = scalar_lea.vmem %s9, %s359
        %p361 = scmp.lt.s32.totalorder %s22, 1
        %s362 = scalar_select %p361, %s22, 1
        %s363 = smul.addr %s362, 8
        %s364 = smul.addr %s363, 4
        %s365 = scalar_lea.vmem %s0, %s364
        %p366 = scmp.lt.s32.totalorder %s22, 1
        %s367 = scalar_select %p366, %s22, 1
        %s368 = smul.addr %s367, 8
        %s369 = smul.addr %s368, 4
        %s370 = scalar_lea.vmem %s9, %s369
        %v374 = vld [vmem:[%s365] sm:$0xf]
        %v375 = vld [vmem:[%s365 + $0x4] sm:$0xf]
        %v376 = vld [vmem:[%s365 + $0x8] sm:$0xf]
        %v377 = vld [vmem:[%s365 + $0xc] sm:$0xf]
        %v378 = vld [vmem:[%s365 + $0x10] sm:$0xf]
        %v379 = vld [vmem:[%s365 + $0x14] sm:$0xf]
        %v380 = vld [vmem:[%s365 + $0x18] sm:$0xf]
        %v381 = vld [vmem:[%s365 + $0x1c] sm:$0xf]
        %v382 = vld [vmem:[%s1] sm:$0xf]
        %v383 = vld [vmem:[#allocation3] sm:$0x1]
        %v385 = vlaneseq
        %v386 = vshrl.u32 %v385, 7
        %v387 = vsub.s32 0, %v386
        %v388 = vrot.slane %v383, %v387
        %v398 = vunpack.c.l.b16 %v374
        %v399 = vunpack.c.l.b16 %v375
        %v400 = vunpack.c.l.b16 %v376
        %v401 = vunpack.c.l.b16 %v377
        %v402 = vunpack.c.l.b16 %v378
        %v403 = vunpack.c.l.b16 %v379
        %v404 = vunpack.c.l.b16 %v380
        %v405 = vunpack.c.l.b16 %v381
        %v406 = vpack.c.b16 %v399, %v398
        %v407 = vpack.c.b16 %v401, %v400
        %v408 = vpack.c.b16 %v403, %v402
        %v409 = vpack.c.b16 %v405, %v404
        %vm410 = vcmask 64512
        %v412 = vsel %vm410, %v406, 0
        %v415 = vsel %vm410, %v407, 0
        %v418 = vsel %vm410, %v408, 0
        %v421 = vsel %vm410, %v409, 0
        %vm423 = vcmask 1043456
        %v425 = vsel %vm423, %v382, 0
        %427 = vmatprep.subr.bf16.mxu0 0
        %428 = vmatpush1.bf16.msra.mxu0 %v425
        %429 = vmatprep.subr.bf16.mxu0 0
        %430 = vmatpush1.bf16.msra.mxu0 0
        %431 = vmatprep.subr.bf16.mxu0 0
        %432 = vmatpush1.bf16.msra.mxu0 0
        %433 = vmatprep.subr.bf16.mxu0 0
        %434 = vmatpush1.bf16.msra.mxu0 0
        %435 = vmatprep.subr.bf16.mxu0 0
        %436 = vmatpush1.bf16.msra.mxu0 0
        %437 = vmatprep.subr.bf16.mxu0 0
        %438 = vmatpush1.bf16.msra.mxu0 0
        %439 = vmatprep.subr.bf16.mxu0 0
        %440 = vmatpush1.bf16.msra.mxu0 0
        %441 = vmatprep.subr.bf16.mxu0 0
        %442 = vmatpush1.bf16.msra.mxu0 0
        %443 = vmatprep.subr.bf16.mxu0 0
        %444 = vmatpush1.bf16.msra.mxu0 0
        %445 = vmatprep.subr.bf16.mxu0 0
        %446 = vmatpush1.bf16.msra.mxu0 0
        %447 = vmatprep.subr.bf16.mxu0 0
        %448 = vmatpush1.bf16.msra.mxu0 0
        %449 = vmatprep.subr.bf16.mxu0 0
        %450 = vmatpush1.bf16.msra.mxu0 0
        %451 = vmatprep.subr.bf16.mxu0 0
        %452 = vmatpush1.bf16.msra.mxu0 0
        %453 = vmatprep.subr.bf16.mxu0 0
        %454 = vmatpush1.bf16.msra.mxu0 0
        %455 = vmatprep.subr.bf16.mxu0 0
        %456 = vmatpush1.bf16.msra.mxu0 0
        %457 = vmatprep.subr.bf16.mxu0 0
        %458 = vmatpush1.bf16.msra.mxu0 0
        %459 = vmatprep.mubr.bf16.mxu0 0
        %460 = vmatmul.mubr.bf16.gmra.mrb[0].mxu0 %v412
        %v461 = vpop.f32.mrb[0].mxu0
        %v462 = vadd.f32 %v388, %v461
        %v463 = vpop.f32.mrb[0].mxu0
        %v464 = vpop.f32.mrb[0].mxu0
        %v465 = vadd.f32 %v388, %v464
        %v466 = vpop.f32.mrb[0].mxu0
        %467 = vmatprep.mubr.bf16.mxu0 0
        %468 = vmatmul.mubr.bf16.gmra.mrb[0].mxu0 %v415
        %v469 = vpop.f32.mrb[0].mxu0
        %v470 = vadd.f32 %v388, %v469
        %v471 = vpop.f32.mrb[0].mxu0
        %v472 = vpop.f32.mrb[0].mxu0
        %v473 = vadd.f32 %v388, %v472
        %v474 = vpop.f32.mrb[0].mxu0
        %475 = vmatprep.mubr.bf16.mxu0 0
        %476 = vmatmul.mubr.bf16.gmra.mrb[0].mxu0 %v418
        %v477 = vpop.f32.mrb[0].mxu0
        %v478 = vadd.f32 %v388, %v477
        %v479 = vpop.f32.mrb[0].mxu0
        %v480 = vpop.f32.mrb[0].mxu0
        %v481 = vadd.f32 %v388, %v480
        %v482 = vpop.f32.mrb[0].mxu0
        %483 = vmatprep.mubr.bf16.mxu0 0
        %484 = vmatmul.mubr.bf16.gmra.mrb[0].mxu0 %v421
        %v485 = vpop.f32.mrb[0].mxu0
        %v486 = vadd.f32 %v388, %v485
        %v487 = vpop.f32.mrb[0].mxu0
        %v488 = vpop.f32.mrb[0].mxu0
        %v489 = vadd.f32 %v388, %v488
        %v490 = vpop.f32.mrb[0].mxu0
        %491 = vdwg.mxu0
        %v492 = vpack.c.bf16 %v465, %v462
        %v493 = vpack.c.bf16 %v473, %v470
        %v494 = vpack.c.bf16 %v481, %v478
        %v495 = vpack.c.bf16 %v489, %v486
        %v496 = vld [vmem:[%s3] sm:$0xf]
        %v497 = vld [vmem:[%s3 + $0x4] sm:$0xf]
        %v498 = vld [vmem:[%s3 + $0x8] sm:$0xf]
        %v499 = vld [vmem:[%s3 + $0xc] sm:$0xf]
        %v500 = vld [vmem:[%s3 + $0x10] sm:$0xf]
        %v501 = vld [vmem:[%s3 + $0x14] sm:$0xf]
        %v502 = vld [vmem:[%s3 + $0x18] sm:$0xf]
        %v503 = vld [vmem:[%s3 + $0x1c] sm:$0xf]
        %v504 = vld [vmem:[#allocation5] sm:$0x1]
        %v506 = vlaneseq
        %v507 = vshrl.u32 %v506, 7
        %v508 = vsub.s32 0, %v507
        %v509 = vrot.slane %v504, %v508
        %v519 = vunpack.c.l.b16 %v496
        %v520 = vunpack.c.l.b16 %v497
        %v521 = vunpack.c.l.b16 %v498
        %v522 = vunpack.c.l.b16 %v499
        %v523 = vunpack.c.l.b16 %v500
        %v524 = vunpack.c.l.b16 %v501
        %v525 = vunpack.c.l.b16 %v502
        %v526 = vunpack.c.l.b16 %v503
        %v527 = vpack.c.b16 %v520, %v519
        %v528 = vpack.c.b16 %v522, %v521
        %v529 = vpack.c.b16 %v524, %v523
        %v530 = vpack.c.b16 %v526, %v525
        %vm535 = vcmask 523264
        %v537 = vsel %vm535, %v492, 0
        %v540 = vsel %vm535, %v493, 0
        %v543 = vsel %vm535, %v494, 0
        %v546 = vsel %vm535, %v495, 0
        %548 = vmatprep.subr.bf16.mxu0 0
        %549 = vmatpush1.bf16.msra.mxu0 %v527
        %550 = vmatprep.subr.bf16.mxu0 0
        %551 = vmatpush1.bf16.msra.mxu0 %v528
        %552 = vmatprep.subr.bf16.mxu0 0
        %553 = vmatpush1.bf16.msra.mxu0 %v529
        %554 = vmatprep.subr.bf16.mxu0 0
        %555 = vmatpush1.bf16.msra.mxu0 %v530
        %556 = vmatprep.subr.bf16.mxu0 0
        %557 = vmatpush1.bf16.msra.mxu0 0
        %558 = vmatprep.subr.bf16.mxu0 0
        %559 = vmatpush1.bf16.msra.mxu0 0
        %560 = vmatprep.subr.bf16.mxu0 0
        %561 = vmatpush1.bf16.msra.mxu0 0
        %562 = vmatprep.subr.bf16.mxu0 0
        %563 = vmatpush1.bf16.msra.mxu0 0
        %564 = vmatprep.subr.bf16.mxu0 0
        %565 = vmatpush1.bf16.msra.mxu0 0
        %566 = vmatprep.subr.bf16.mxu0 0
        %567 = vmatpush1.bf16.msra.mxu0 0
        %568 = vmatprep.subr.bf16.mxu0 0
        %569 = vmatpush1.bf16.msra.mxu0 0
        %570 = vmatprep.subr.bf16.mxu0 0
        %571 = vmatpush1.bf16.msra.mxu0 0
        %572 = vmatprep.subr.bf16.mxu0 0
        %573 = vmatpush1.bf16.msra.mxu0 0
        %574 = vmatprep.subr.bf16.mxu0 0
        %575 = vmatpush1.bf16.msra.mxu0 0
        %576 = vmatprep.subr.bf16.mxu0 0
        %577 = vmatpush1.bf16.msra.mxu0 0
        %578 = vmatprep.subr.bf16.mxu0 0
        %579 = vmatpush1.bf16.msra.mxu0 0
        %580 = vmatprep.mubr.bf16.mxu0 0
        %581 = vmatmul.mubr.bf16.gmra.mrb[0].mxu0 %v537
        %v582 = vpop.f32.mrb[0].mxu0
        %v583 = vadd.f32 %v509, %v582
        %v584 = vpop.f32.mrb[0].mxu0
        %v585 = vpop.f32.mrb[0].mxu0
        %v586 = vadd.f32 %v509, %v585
        %v587 = vpop.f32.mrb[0].mxu0
        %588 = vmatprep.mubr.bf16.mxu0 0
        %589 = vmatmul.mubr.bf16.gmra.mrb[0].mxu0 %v540
        %v590 = vpop.f32.mrb[0].mxu0
        %v591 = vadd.f32 %v509, %v590
        %v592 = vpop.f32.mrb[0].mxu0
        %v593 = vpop.f32.mrb[0].mxu0
        %v594 = vadd.f32 %v509, %v593
        %v595 = vpop.f32.mrb[0].mxu0
        %596 = vmatprep.mubr.bf16.mxu0 0
        %597 = vmatmul.mubr.bf16.gmra.mrb[0].mxu0 %v543
        %v598 = vpop.f32.mrb[0].mxu0
        %v599 = vadd.f32 %v509, %v598
        %v600 = vpop.f32.mrb[0].mxu0
        %v601 = vpop.f32.mrb[0].mxu0
        %v602 = vadd.f32 %v509, %v601
        %v603 = vpop.f32.mrb[0].mxu0
        %604 = vmatprep.mubr.bf16.mxu0 0
        %605 = vmatmul.mubr.bf16.gmra.mrb[0].mxu0 %v546
        %v606 = vpop.f32.mrb[0].mxu0
        %v607 = vadd.f32 %v509, %v606
        %v608 = vpop.f32.mrb[0].mxu0
        %v609 = vpop.f32.mrb[0].mxu0
        %v610 = vadd.f32 %v509, %v609
        %v611 = vpop.f32.mrb[0].mxu0
        %612 = vdwg.mxu0
        %v613 = vadd.f32 %v583, %v462
        %v614 = vadd.f32 %v586, %v465
        %v615 = vadd.f32 %v591, %v470
        %v616 = vadd.f32 %v594, %v473
        %v617 = vadd.f32 %v599, %v478
        %v618 = vadd.f32 %v602, %v481
        %v619 = vadd.f32 %v607, %v486
        %v620 = vadd.f32 %v610, %v489
        %v621 = vmax.f32 %v613, 0.0
        %v622 = vmax.f32 %v614, 0.0
        %v623 = vmax.f32 %v615, 0.0
        %v624 = vmax.f32 %v616, 0.0
        %v625 = vmax.f32 %v617, 0.0
        %v626 = vmax.f32 %v618, 0.0
        %v627 = vmax.f32 %v619, 0.0
        %v628 = vmax.f32 %v620, 0.0
        %629 = vst.msk [vmem:[#allocation2] sm:$0xff] %vm535, 0
        %630 = vst.msk [vmem:[#allocation2 + $0x28] sm:$0xff] %vm535, 0
        %v631 = vpack.c.bf16 %v622, %v621
        %v632 = vpack.c.bf16 %v624, %v623
        %v633 = vpack.c.bf16 %v626, %v625
        %v634 = vpack.c.bf16 %v628, %v627
        %635 = vst.msk [vmem:[#allocation2 + $0x8] sm:$0xff] %vm535, %v631
        %636 = vst.msk [vmem:[#allocation2 + $0x10] sm:$0xff] %vm535, %v632
        %637 = vst.msk [vmem:[#allocation2 + $0x18] sm:$0xff] %vm535, %v633
        %638 = vst.msk [vmem:[#allocation2 + $0x20] sm:$0xff] %vm535, %v634
        %v639 = vlaneseq
        %v640 = vshrl.u32 %v639, 7
        %v641 = vadd.s32 %v640, 8
        %v642 = vadd.s32 %v640, 16
        %v643 = vadd.s32 %v640, 24
        %v644 = vadd.s32 %v640, 32
        %v645 = vadd.s32 %v640, 40
        %v646 = vadd.s32 %v640, 48
        %v647 = vadd.s32 %v640, 56
        %v648 = vand.u32 %v640, 7
        %v649 = vand.u32 %v641, 7
        %v650 = vand.u32 %v642, 7
        %v651 = vand.u32 %v643, 7
        %v652 = vand.u32 %v644, 7
        %v653 = vand.u32 %v645, 7
        %v654 = vand.u32 %v646, 7
        %v655 = vand.u32 %v647, 7
        %vm656 = vcmp.ne.s32.totalorder %v648, 0
        %vm657 = vcmp.ne.s32.totalorder %v649, 0
        %vm658 = vcmp.ne.s32.totalorder %v650, 0
        %vm659 = vcmp.ne.s32.totalorder %v651, 0
        %vm660 = vcmp.ne.s32.totalorder %v652, 0
        %vm661 = vcmp.ne.s32.totalorder %v653, 0
        %vm662 = vcmp.ne.s32.totalorder %v654, 0
        %vm663 = vcmp.ne.s32.totalorder %v655, 0
        %vm664 = vcmp.ne.s32.totalorder %v648, 7
        %vm665 = vcmp.ne.s32.totalorder %v649, 7
        %vm666 = vcmp.ne.s32.totalorder %v650, 7
        %vm667 = vcmp.ne.s32.totalorder %v651, 7
        %vm668 = vcmp.ne.s32.totalorder %v652, 7
        %vm669 = vcmp.ne.s32.totalorder %v653, 7
        %vm670 = vcmp.ne.s32.totalorder %v654, 7
        %vm671 = vcmp.ne.s32.totalorder %v655, 7
        %v672 = vld [vmem:[#allocation7] sm:$0x1]
        %v674 = vlaneseq
        %v675 = vshrl.u32 %v674, 7
        %v676 = vsub.s32 0, %v675
        %v677 = vrot.slane %v672, %v676
        %v679 = vadd.f32 %v677, %v621
        %v680 = vadd.f32 %v677, %v622
        %v681 = vadd.f32 %v677, %v623
        %v682 = vadd.f32 %v677, %v624
        %v683 = vadd.f32 %v677, %v625
        %v684 = vadd.f32 %v677, %v626
        %v685 = vadd.f32 %v677, %v627
        %v686 = vadd.f32 %v677, %v628
        %v687 = vld [vmem:[#allocation2] sm:$0xf8]
        %v688 = vld [vmem:[#allocation2 + $0x8] sm:$0xff]
        %v689 = vld [vmem:[#allocation2 + $0x10] sm:$0xff]
        %v690 = vld [vmem:[#allocation2 + $0x18] sm:$0xff]
        %v691 = vld [vmem:[#allocation2 + $0x20] sm:$0xf]
        %v692 = vsel %vm656, 1, 0
        %v693 = vsel %vm657, 1, 0
        %v694 = vsel %vm658, 1, 0
        %v695 = vsel %vm659, 1, 0
        %v696 = vsel %vm660, 1, 0
        %v697 = vsel %vm661, 1, 0
        %v698 = vsel %vm662, 1, 0
        %v699 = vsel %vm663, 1, 0
        %vm700 = vcmp.eq.s32.totalorder %v692, 1
        %vm701 = vcmp.eq.s32.totalorder %v693, 1
        %vm702 = vcmp.eq.s32.totalorder %v694, 1
        %vm703 = vcmp.eq.s32.totalorder %v695, 1
        %vm704 = vcmp.eq.s32.totalorder %v696, 1
        %vm705 = vcmp.eq.s32.totalorder %v697, 1
        %vm706 = vcmp.eq.s32.totalorder %v698, 1
        %vm707 = vcmp.eq.s32.totalorder %v699, 1
        %vm708 = vmpackc.low %vm700, %vm700
        %vm709 = vmpackc.low %vm701, %vm701
        %vm710 = vmpackc.low %vm702, %vm702
        %vm711 = vmpackc.low %vm703, %vm703
        %vm712 = vmpackc.low %vm704, %vm704
        %vm713 = vmpackc.low %vm705, %vm705
        %vm714 = vmpackc.low %vm706, %vm706
        %vm715 = vmpackc.low %vm707, %vm707
        %v716 = vsel %vm708, 65537, 0
        %v717 = vsel %vm709, 65537, 0
        %v718 = vsel %vm710, 65537, 0
        %v719 = vsel %vm711, 65537, 0
        %v720 = vsel %vm712, 65537, 0
        %v721 = vsel %vm713, 65537, 0
        %v722 = vsel %vm714, 65537, 0
        %v723 = vsel %vm715, 65537, 0
        %v724 = vunpack.c.l.b16 %v716
        %v725 = vunpack.c.l.b16 %v717
        %v726 = vunpack.c.l.b16 %v718
        %v727 = vunpack.c.l.b16 %v719
        %v728 = vunpack.c.l.b16 %v720
        %v729 = vunpack.c.l.b16 %v721
        %v730 = vunpack.c.l.b16 %v722
        %v731 = vunpack.c.l.b16 %v723
        %v732 = vpack.c.b16 %v725, %v724
        %v733 = vpack.c.b16 %v727, %v726
        %v734 = vpack.c.b16 %v729, %v728
        %v735 = vpack.c.b16 %v731, %v730
        %vm736 = vsmask.f32 3328
        %v738 = vshrl.u32 %v732, 16
        %v740 = vrot.slane %v738, 4
        %v741 = vshll.u32 %v732, 16
        %v743 = vrot.slane %v741, 5
        %v744 = vor.u32 %v740, %v743
        %v746 = vshrl.u32 %v733, 16
        %v748 = vrot.slane %v746, 4
        %v749 = vshll.u32 %v733, 16
        %v751 = vrot.slane %v749, 5
        %v752 = vor.u32 %v748, %v751
        %v753 = vsel %vm736, %v744, %v752
        %v755 = vshrl.u32 %v734, 16
        %v757 = vrot.slane %v755, 4
        %v758 = vshll.u32 %v734, 16
        %v760 = vrot.slane %v758, 5
        %v761 = vor.u32 %v757, %v760
        %v762 = vsel %vm736, %v752, %v761
        %v764 = vshrl.u32 %v735, 16
        %v766 = vrot.slane %v764, 4
        %v767 = vshll.u32 %v735, 16
        %v769 = vrot.slane %v767, 5
        %v770 = vor.u32 %v766, %v769
        %v771 = vsel %vm736, %v761, %v770
        %vm772 = vcmp.ne.s16.totalorder %v744, 0
        %vm773 = vcmp.ne.s16.totalorder %v753, 0
        %vm774 = vcmp.ne.s16.totalorder %v762, 0
        %vm775 = vcmp.ne.s16.totalorder %v771, 0
        %vm776 = vcmp.ne.s16.totalorder %v770, 0
        %v777 = vsel %vm772, %v687, 0
        %v778 = vsel %vm773, %v688, 0
        %v779 = vsel %vm774, %v689, 0
        %v780 = vsel %vm775, %v690, 0
        %v781 = vsel %vm776, %v691, 0
        %v782 = vld [vmem:[%s5] sm:$0xf]
        %v783 = vld [vmem:[%s5 + $0x4] sm:$0xf]
        %v784 = vld [vmem:[%s5 + $0x8] sm:$0xf]
        %v785 = vld [vmem:[%s5 + $0xc] sm:$0xf]
        %v786 = vld [vmem:[%s5 + $0x10] sm:$0xf]
        %v787 = vld [vmem:[%s5 + $0x14] sm:$0xf]
        %v788 = vld [vmem:[%s5 + $0x18] sm:$0xf]
        %v789 = vld [vmem:[%s5 + $0x1c] sm:$0xf]
        %vm790 = vsmask.f32 4352
        %v792 = vshrl.u32 %v777, 16
        %v794 = vrot.slane %v792, 3
        %v795 = vshll.u32 %v777, 16
        %v797 = vrot.slane %v795, 4
        %v798 = vor.u32 %v794, %v797
        %v800 = vshrl.u32 %v778, 16
        %v802 = vrot.slane %v800, 3
        %v803 = vshll.u32 %v778, 16
        %v805 = vrot.slane %v803, 4
        %v806 = vor.u32 %v802, %v805
        %v807 = vsel %vm790, %v798, %v806
        %v809 = vshrl.u32 %v779, 16
        %v811 = vrot.slane %v809, 3
        %v812 = vshll.u32 %v779, 16
        %v814 = vrot.slane %v812, 4
        %v815 = vor.u32 %v811, %v814
        %v816 = vsel %vm790, %v806, %v815
        %v818 = vshrl.u32 %v780, 16
        %v820 = vrot.slane %v818, 3
        %v821 = vshll.u32 %v780, 16
        %v823 = vrot.slane %v821, 4
        %v824 = vor.u32 %v820, %v823
        %v825 = vsel %vm790, %v815, %v824
        %v827 = vshrl.u32 %v781, 16
        %v829 = vrot.slane %v827, 3
        %v830 = vshll.u32 %v781, 16
        %v832 = vrot.slane %v830, 4
        %v833 = vor.u32 %v829, %v832
        %v834 = vsel %vm790, %v824, %v833
        %v843 = vunpack.c.l.b16 %v782
        %v844 = vunpack.c.l.b16 %v783
        %v845 = vunpack.c.l.b16 %v784
        %v846 = vunpack.c.l.b16 %v785
        %v847 = vunpack.c.l.b16 %v786
        %v848 = vunpack.c.l.b16 %v787
        %v849 = vunpack.c.l.b16 %v788
        %v850 = vunpack.c.l.b16 %v789
        %v851 = vpack.c.b16 %v844, %v843
        %v852 = vpack.c.b16 %v846, %v845
        %v853 = vpack.c.b16 %v848, %v847
        %v854 = vpack.c.b16 %v850, %v849
        %v860 = vsel %vm535, %v807, 0
        %v863 = vsel %vm535, %v816, 0
        %v866 = vsel %vm535, %v825, 0
        %v869 = vsel %vm535, %v834, 0
        %871 = vmatprep.subr.bf16.mxu0 0
        %872 = vmatpush1.bf16.msra.mxu0 %v851
        %873 = vmatprep.subr.bf16.mxu0 0
        %874 = vmatpush1.bf16.msra.mxu0 %v852
        %875 = vmatprep.subr.bf16.mxu0 0
        %876 = vmatpush1.bf16.msra.mxu0 %v853
        %877 = vmatprep.subr.bf16.mxu0 0
        %878 = vmatpush1.bf16.msra.mxu0 %v854
        %879 = vmatprep.subr.bf16.mxu0 0
        %880 = vmatpush1.bf16.msra.mxu0 0
        %881 = vmatprep.subr.bf16.mxu0 0
        %882 = vmatpush1.bf16.msra.mxu0 0
        %883 = vmatprep.subr.bf16.mxu0 0
        %884 = vmatpush1.bf16.msra.mxu0 0
        %885 = vmatprep.subr.bf16.mxu0 0
        %886 = vmatpush1.bf16.msra.mxu0 0
        %887 = vmatprep.subr.bf16.mxu0 0
        %888 = vmatpush1.bf16.msra.mxu0 0
        %889 = vmatprep.subr.bf16.mxu0 0
        %890 = vmatpush1.bf16.msra.mxu0 0
        %891 = vmatprep.subr.bf16.mxu0 0
        %892 = vmatpush1.bf16.msra.mxu0 0
        %893 = vmatprep.subr.bf16.mxu0 0
        %894 = vmatpush1.bf16.msra.mxu0 0
        %895 = vmatprep.subr.bf16.mxu0 0
        %896 = vmatpush1.bf16.msra.mxu0 0
        %897 = vmatprep.subr.bf16.mxu0 0
        %898 = vmatpush1.bf16.msra.mxu0 0
        %899 = vmatprep.subr.bf16.mxu0 0
        %900 = vmatpush1.bf16.msra.mxu0 0
        %901 = vmatprep.subr.bf16.mxu0 0
        %902 = vmatpush1.bf16.msra.mxu0 0
        %903 = vmatprep.mubr.bf16.mxu0 0
        %904 = vmatmul.mubr.bf16.gmra.mrb[0].mxu0 %v860
        %v905 = vpop.f32.mrb[0].mxu0
        %v906 = vadd.f32 0.0, %v905
        %v907 = vpop.f32.mrb[0].mxu0
        %v908 = vpop.f32.mrb[0].mxu0
        %v909 = vadd.f32 0.0, %v908
        %v910 = vpop.f32.mrb[0].mxu0
        %911 = vmatprep.mubr.bf16.mxu0 0
        %912 = vmatmul.mubr.bf16.gmra.mrb[0].mxu0 %v863
        %v913 = vpop.f32.mrb[0].mxu0
        %v914 = vadd.f32 0.0, %v913
        %v915 = vpop.f32.mrb[0].mxu0
        %v916 = vpop.f32.mrb[0].mxu0
        %v917 = vadd.f32 0.0, %v916
        %v918 = vpop.f32.mrb[0].mxu0
        %919 = vmatprep.mubr.bf16.mxu0 0
        %920 = vmatmul.mubr.bf16.gmra.mrb[0].mxu0 %v866
        %v921 = vpop.f32.mrb[0].mxu0
        %v922 = vadd.f32 0.0, %v921
        %v923 = vpop.f32.mrb[0].mxu0
        %v924 = vpop.f32.mrb[0].mxu0
        %v925 = vadd.f32 0.0, %v924
        %v926 = vpop.f32.mrb[0].mxu0
        %927 = vmatprep.mubr.bf16.mxu0 0
        %928 = vmatmul.mubr.bf16.gmra.mrb[0].mxu0 %v869
        %v929 = vpop.f32.mrb[0].mxu0
        %v930 = vadd.f32 0.0, %v929
        %v931 = vpop.f32.mrb[0].mxu0
        %v932 = vpop.f32.mrb[0].mxu0
        %v933 = vadd.f32 0.0, %v932
        %v934 = vpop.f32.mrb[0].mxu0
        %935 = vdwg.mxu0
        %v936 = vadd.f32 %v679, %v906
        %v937 = vadd.f32 %v680, %v909
        %v938 = vadd.f32 %v681, %v914
        %v939 = vadd.f32 %v682, %v917
        %v940 = vadd.f32 %v683, %v922
        %v941 = vadd.f32 %v684, %v925
        %v942 = vadd.f32 %v685, %v930
        %v943 = vadd.f32 %v686, %v933
        %v944 = vld [vmem:[#allocation2] sm:$0xf0]
        %s945 = scalar_lea.vmem %s5, 32
        %v946 = vld [vmem:[%s945] sm:$0xf]
        %v947 = vld [vmem:[%s945 + $0x4] sm:$0xf]
        %v948 = vld [vmem:[%s945 + $0x8] sm:$0xf]
        %v949 = vld [vmem:[%s945 + $0xc] sm:$0xf]
        %v950 = vld [vmem:[%s945 + $0x10] sm:$0xf]
        %v951 = vld [vmem:[%s945 + $0x14] sm:$0xf]
        %v952 = vld [vmem:[%s945 + $0x18] sm:$0xf]
        %v953 = vld [vmem:[%s945 + $0x1c] sm:$0xf]
        %vm959 = vcmask 1043456
        %v960 = vrot.slane %v944, 4
        %v961 = vrot.slane %v688, 4
        %v962 = vsel %vm959, %v960, %v961
        %v963 = vrot.slane %v689, 4
        %v964 = vsel %vm959, %v961, %v963
        %v965 = vrot.slane %v690, 4
        %v966 = vsel %vm959, %v963, %v965
        %v967 = vrot.slane %v691, 4
        %v968 = vsel %vm959, %v965, %v967
        %v977 = vunpack.c.l.b16 %v946
        %v978 = vunpack.c.l.b16 %v947
        %v979 = vunpack.c.l.b16 %v948
        %v980 = vunpack.c.l.b16 %v949
        %v981 = vunpack.c.l.b16 %v950
        %v982 = vunpack.c.l.b16 %v951
        %v983 = vunpack.c.l.b16 %v952
        %v984 = vunpack.c.l.b16 %v953
        %v985 = vpack.c.b16 %v978, %v977
        %v986 = vpack.c.b16 %v980, %v979
        %v987 = vpack.c.b16 %v982, %v981
        %v988 = vpack.c.b16 %v984, %v983
        %v994 = vsel %vm535, %v962, 0
        %v997 = vsel %vm535, %v964, 0
        %v1000 = vsel %vm535, %v966, 0
        %v1003 = vsel %vm535, %v968, 0
        %1005 = vmatprep.subr.bf16.mxu0 0
        %1006 = vmatpush1.bf16.msra.mxu0 %v985
        %1007 = vmatprep.subr.bf16.mxu0 0
        %1008 = vmatpush1.bf16.msra.mxu0 %v986
        %1009 = vmatprep.subr.bf16.mxu0 0
        %1010 = vmatpush1.bf16.msra.mxu0 %v987
        %1011 = vmatprep.subr.bf16.mxu0 0
        %1012 = vmatpush1.bf16.msra.mxu0 %v988
        %1013 = vmatprep.subr.bf16.mxu0 0
        %1014 = vmatpush1.bf16.msra.mxu0 0
        %1015 = vmatprep.subr.bf16.mxu0 0
        %1016 = vmatpush1.bf16.msra.mxu0 0
        %1017 = vmatprep.subr.bf16.mxu0 0
        %1018 = vmatpush1.bf16.msra.mxu0 0
        %1019 = vmatprep.subr.bf16.mxu0 0
        %1020 = vmatpush1.bf16.msra.mxu0 0
        %1021 = vmatprep.subr.bf16.mxu0 0
        %1022 = vmatpush1.bf16.msra.mxu0 0
        %1023 = vmatprep.subr.bf16.mxu0 0
        %1024 = vmatpush1.bf16.msra.mxu0 0
        %1025 = vmatprep.subr.bf16.mxu0 0
        %1026 = vmatpush1.bf16.msra.mxu0 0
        %1027 = vmatprep.subr.bf16.mxu0 0
        %1028 = vmatpush1.bf16.msra.mxu0 0
        %1029 = vmatprep.subr.bf16.mxu0 0
        %1030 = vmatpush1.bf16.msra.mxu0 0
        %1031 = vmatprep.subr.bf16.mxu0 0
        %1032 = vmatpush1.bf16.msra.mxu0 0
        %1033 = vmatprep.subr.bf16.mxu0 0
        %1034 = vmatpush1.bf16.msra.mxu0 0
        %1035 = vmatprep.subr.bf16.mxu0 0
        %1036 = vmatpush1.bf16.msra.mxu0 0
        %1037 = vmatprep.mubr.bf16.mxu0 0
        %1038 = vmatmul.mubr.bf16.gmra.mrb[0].mxu0 %v994
        %v1039 = vpop.f32.mrb[0].mxu0
        %v1040 = vadd.f32 0.0, %v1039
        %v1041 = vpop.f32.mrb[0].mxu0
        %v1042 = vpop.f32.mrb[0].mxu0
        %v1043 = vadd.f32 0.0, %v1042
        %v1044 = vpop.f32.mrb[0].mxu0
        %1045 = vmatprep.mubr.bf16.mxu0 0
        %1046 = vmatmul.mubr.bf16.gmra.mrb[0].mxu0 %v997
        %v1047 = vpop.f32.mrb[0].mxu0
        %v1048 = vadd.f32 0.0, %v1047
        %v1049 = vpop.f32.mrb[0].mxu0
        %v1050 = vpop.f32.mrb[0].mxu0
        %v1051 = vadd.f32 0.0, %v1050
        %v1052 = vpop.f32.mrb[0].mxu0
        %1053 = vmatprep.mubr.bf16.mxu0 0
        %1054 = vmatmul.mubr.bf16.gmra.mrb[0].mxu0 %v1000
        %v1055 = vpop.f32.mrb[0].mxu0
        %v1056 = vadd.f32 0.0, %v1055
        %v1057 = vpop.f32.mrb[0].mxu0
        %v1058 = vpop.f32.mrb[0].mxu0
        %v1059 = vadd.f32 0.0, %v1058
        %v1060 = vpop.f32.mrb[0].mxu0
        %1061 = vmatprep.mubr.bf16.mxu0 0
        %1062 = vmatmul.mubr.bf16.gmra.mrb[0].mxu0 %v1003
        %v1063 = vpop.f32.mrb[0].mxu0
        %v1064 = vadd.f32 0.0, %v1063
        %v1065 = vpop.f32.mrb[0].mxu0
        %v1066 = vpop.f32.mrb[0].mxu0
        %v1067 = vadd.f32 0.0, %v1066
        %v1068 = vpop.f32.mrb[0].mxu0
        %1069 = vdwg.mxu0
        %v1070 = vadd.f32 %v936, %v1040
        %v1071 = vadd.f32 %v937, %v1043
        %v1072 = vadd.f32 %v938, %v1048
        %v1073 = vadd.f32 %v939, %v1051
        %v1074 = vadd.f32 %v940, %v1056
        %v1075 = vadd.f32 %v941, %v1059
        %v1076 = vadd.f32 %v942, %v1064
        %v1077 = vadd.f32 %v943, %v1067
        %v1078 = vld [vmem:[#allocation2 + $0x20] sm:$0x1f]
        %v1079 = vsel %vm664, 1, 0
        %v1080 = vsel %vm665, 1, 0
        %v1081 = vsel %vm666, 1, 0
        %v1082 = vsel %vm667, 1, 0
        %v1083 = vsel %vm668, 1, 0
        %v1084 = vsel %vm669, 1, 0
        %v1085 = vsel %vm670, 1, 0
        %v1086 = vsel %vm671, 1, 0
        %vm1087 = vcmp.eq.s32.totalorder %v1079, 1
        %vm1088 = vcmp.eq.s32.totalorder %v1080, 1
        %vm1089 = vcmp.eq.s32.totalorder %v1081, 1
        %vm1090 = vcmp.eq.s32.totalorder %v1082, 1
        %vm1091 = vcmp.eq.s32.totalorder %v1083, 1
        %vm1092 = vcmp.eq.s32.totalorder %v1084, 1
        %vm1093 = vcmp.eq.s32.totalorder %v1085, 1
        %vm1094 = vcmp.eq.s32.totalorder %v1086, 1
        %vm1095 = vmpackc.low %vm1087, %vm1087
        %vm1096 = vmpackc.low %vm1088, %vm1088
        %vm1097 = vmpackc.low %vm1089, %vm1089
        %vm1098 = vmpackc.low %vm1090, %vm1090
        %vm1099 = vmpackc.low %vm1091, %vm1091
        %vm1100 = vmpackc.low %vm1092, %vm1092
        %vm1101 = vmpackc.low %vm1093, %vm1093
        %vm1102 = vmpackc.low %vm1094, %vm1094
        %v1103 = vsel %vm1095, 65537, 0
        %v1104 = vsel %vm1096, 65537, 0
        %v1105 = vsel %vm1097, 65537, 0
        %v1106 = vsel %vm1098, 65537, 0
        %v1107 = vsel %vm1099, 65537, 0
        %v1108 = vsel %vm1100, 65537, 0
        %v1109 = vsel %vm1101, 65537, 0
        %v1110 = vsel %vm1102, 65537, 0
        %v1111 = vunpack.c.l.b16 %v1103
        %v1112 = vunpack.c.l.b16 %v1104
        %v1113 = vunpack.c.l.b16 %v1105
        %v1114 = vunpack.c.l.b16 %v1106
        %v1115 = vunpack.c.l.b16 %v1107
        %v1116 = vunpack.c.l.b16 %v1108
        %v1117 = vunpack.c.l.b16 %v1109
        %v1118 = vunpack.c.l.b16 %v1110
        %v1119 = vpack.c.b16 %v1112, %v1111
        %v1120 = vpack.c.b16 %v1114, %v1113
        %v1121 = vpack.c.b16 %v1116, %v1115
        %v1122 = vpack.c.b16 %v1118, %v1117
        %v1124 = vshrl.u32 %v1119, 16
        %v1126 = vrot.slane %v1124, 3
        %v1127 = vshll.u32 %v1119, 16
        %v1129 = vrot.slane %v1127, 4
        %v1130 = vor.u32 %v1126, %v1129
        %v1132 = vshrl.u32 %v1120, 16
        %v1134 = vrot.slane %v1132, 3
        %v1135 = vshll.u32 %v1120, 16
        %v1137 = vrot.slane %v1135, 4
        %v1138 = vor.u32 %v1134, %v1137
        %v1139 = vsel %vm790, %v1130, %v1138
        %v1141 = vshrl.u32 %v1121, 16
        %v1143 = vrot.slane %v1141, 3
        %v1144 = vshll.u32 %v1121, 16
        %v1146 = vrot.slane %v1144, 4
        %v1147 = vor.u32 %v1143, %v1146
        %v1148 = vsel %vm790, %v1138, %v1147
        %v1150 = vshrl.u32 %v1122, 16
        %v1152 = vrot.slane %v1150, 3
        %v1153 = vshll.u32 %v1122, 16
        %v1155 = vrot.slane %v1153, 4
        %v1156 = vor.u32 %v1152, %v1155
        %v1157 = vsel %vm790, %v1147, %v1156
        %vm1158 = vcmp.ne.s16.totalorder %v1130, 0
        %vm1159 = vcmp.ne.s16.totalorder %v1139, 0
        %vm1160 = vcmp.ne.s16.totalorder %v1148, 0
        %vm1161 = vcmp.ne.s16.totalorder %v1157, 0
        %vm1162 = vcmp.ne.s16.totalorder %v1156, 0
        %v1163 = vsel %vm1158, %v944, 0
        %v1164 = vsel %vm1159, %v688, 0
        %v1165 = vsel %vm1160, %v689, 0
        %v1166 = vsel %vm1161, %v690, 0
        %v1167 = vsel %vm1162, %v1078, 0
        %s1168 = scalar_lea.vmem %s5, 64
        %v1169 = vld [vmem:[%s1168] sm:$0xf]
        %v1170 = vld [vmem:[%s1168 + $0x4] sm:$0xf]
        %v1171 = vld [vmem:[%s1168 + $0x8] sm:$0xf]
        %v1172 = vld [vmem:[%s1168 + $0xc] sm:$0xf]
        %v1173 = vld [vmem:[%s1168 + $0x10] sm:$0xf]
        %v1174 = vld [vmem:[%s1168 + $0x14] sm:$0xf]
        %v1175 = vld [vmem:[%s1168 + $0x18] sm:$0xf]
        %v1176 = vld [vmem:[%s1168 + $0x1c] sm:$0xf]
        %v1178 = vshrl.u32 %v1163, 16
        %v1180 = vrot.slane %v1178, 4
        %v1181 = vshll.u32 %v1163, 16
        %v1183 = vrot.slane %v1181, 5
        %v1184 = vor.u32 %v1180, %v1183
        %v1186 = vshrl.u32 %v1164, 16
        %v1188 = vrot.slane %v1186, 4
        %v1189 = vshll.u32 %v1164, 16
        %v1191 = vrot.slane %v1189, 5
        %v1192 = vor.u32 %v1188, %v1191
        %v1193 = vsel %vm736, %v1184, %v1192
        %v1195 = vshrl.u32 %v1165, 16
        %v1197 = vrot.slane %v1195, 4
        %v1198 = vshll.u32 %v1165, 16
        %v1200 = vrot.slane %v1198, 5
        %v1201 = vor.u32 %v1197, %v1200
        %v1202 = vsel %vm736, %v1192, %v1201
        %v1204 = vshrl.u32 %v1166, 16
        %v1206 = vrot.slane %v1204, 4
        %v1207 = vshll.u32 %v1166, 16
        %v1209 = vrot.slane %v1207, 5
        %v1210 = vor.u32 %v1206, %v1209
        %v1211 = vsel %vm736, %v1201, %v1210
        %v1213 = vshrl.u32 %v1167, 16
        %v1215 = vrot.slane %v1213, 4
        %v1216 = vshll.u32 %v1167, 16
        %v1218 = vrot.slane %v1216, 5
        %v1219 = vor.u32 %v1215, %v1218
        %v1220 = vsel %vm736, %v1210, %v1219
        %v1229 = vunpack.c.l.b16 %v1169
        %v1230 = vunpack.c.l.b16 %v1170
        %v1231 = vunpack.c.l.b16 %v1171
        %v1232 = vunpack.c.l.b16 %v1172
        %v1233 = vunpack.c.l.b16 %v1173
        %v1234 = vunpack.c.l.b16 %v1174
        %v1235 = vunpack.c.l.b16 %v1175
        %v1236 = vunpack.c.l.b16 %v1176
        %v1237 = vpack.c.b16 %v1230, %v1229
        %v1238 = vpack.c.b16 %v1232, %v1231
        %v1239 = vpack.c.b16 %v1234, %v1233
        %v1240 = vpack.c.b16 %v1236, %v1235
        %v1246 = vsel %vm535, %v1193, 0
        %v1249 = vsel %vm535, %v1202, 0
        %v1252 = vsel %vm535, %v1211, 0
        %v1255 = vsel %vm535, %v1220, 0
        %1257 = vmatprep.subr.bf16.mxu0 0
        %1258 = vmatpush1.bf16.msra.mxu0 %v1237
        %1259 = vmatprep.subr.bf16.mxu0 0
        %1260 = vmatpush1.bf16.msra.mxu0 %v1238
        %1261 = vmatprep.subr.bf16.mxu0 0
        %1262 = vmatpush1.bf16.msra.mxu0 %v1239
        %1263 = vmatprep.subr.bf16.mxu0 0
        %1264 = vmatpush1.bf16.msra.mxu0 %v1240
        %1265 = vmatprep.subr.bf16.mxu0 0
        %1266 = vmatpush1.bf16.msra.mxu0 0
        %1267 = vmatprep.subr.bf16.mxu0 0
        %1268 = vmatpush1.bf16.msra.mxu0 0
        %1269 = vmatprep.subr.bf16.mxu0 0
        %1270 = vmatpush1.bf16.msra.mxu0 0
        %1271 = vmatprep.subr.bf16.mxu0 0
        %1272 = vmatpush1.bf16.msra.mxu0 0
        %1273 = vmatprep.subr.bf16.mxu0 0
        %1274 = vmatpush1.bf16.msra.mxu0 0
        %1275 = vmatprep.subr.bf16.mxu0 0
        %1276 = vmatpush1.bf16.msra.mxu0 0
        %1277 = vmatprep.subr.bf16.mxu0 0
        %1278 = vmatpush1.bf16.msra.mxu0 0
        %1279 = vmatprep.subr.bf16.mxu0 0
        %1280 = vmatpush1.bf16.msra.mxu0 0
        %1281 = vmatprep.subr.bf16.mxu0 0
        %1282 = vmatpush1.bf16.msra.mxu0 0
        %1283 = vmatprep.subr.bf16.mxu0 0
        %1284 = vmatpush1.bf16.msra.mxu0 0
        %1285 = vmatprep.subr.bf16.mxu0 0
        %1286 = vmatpush1.bf16.msra.mxu0 0
        %1287 = vmatprep.subr.bf16.mxu0 0
        %1288 = vmatpush1.bf16.msra.mxu0 0
        %1289 = vmatprep.mubr.bf16.mxu0 0
        %1290 = vmatmul.mubr.bf16.gmra.mrb[0].mxu0 %v1246
        %v1291 = vpop.f32.mrb[0].mxu0
        %v1292 = vadd.f32 0.0, %v1291
        %v1293 = vpop.f32.mrb[0].mxu0
        %v1294 = vpop.f32.mrb[0].mxu0
        %v1295 = vadd.f32 0.0, %v1294
        %v1296 = vpop.f32.mrb[0].mxu0
        %1297 = vmatprep.mubr.bf16.mxu0 0
        %1298 = vmatmul.mubr.bf16.gmra.mrb[0].mxu0 %v1249
        %v1299 = vpop.f32.mrb[0].mxu0
        %v1300 = vadd.f32 0.0, %v1299
        %v1301 = vpop.f32.mrb[0].mxu0
        %v1302 = vpop.f32.mrb[0].mxu0
        %v1303 = vadd.f32 0.0, %v1302
        %v1304 = vpop.f32.mrb[0].mxu0
        %1305 = vmatprep.mubr.bf16.mxu0 0
        %1306 = vmatmul.mubr.bf16.gmra.mrb[0].mxu0 %v1252
        %v1307 = vpop.f32.mrb[0].mxu0
        %v1308 = vadd.f32 0.0, %v1307
        %v1309 = vpop.f32.mrb[0].mxu0
        %v1310 = vpop.f32.mrb[0].mxu0
        %v1311 = vadd.f32 0.0, %v1310
        %v1312 = vpop.f32.mrb[0].mxu0
        %1313 = vmatprep.mubr.bf16.mxu0 0
        %1314 = vmatmul.mubr.bf16.gmra.mrb[0].mxu0 %v1255
        %v1315 = vpop.f32.mrb[0].mxu0
        %v1316 = vadd.f32 0.0, %v1315
        %v1317 = vpop.f32.mrb[0].mxu0
        %v1318 = vpop.f32.mrb[0].mxu0
        %v1319 = vadd.f32 0.0, %v1318
        %v1320 = vpop.f32.mrb[0].mxu0
        %1321 = vdwg.mxu0
        %v1322 = vadd.f32 %v1070, %v1292
        %v1323 = vadd.f32 %v1071, %v1295
        %v1324 = vadd.f32 %v1072, %v1300
        %v1325 = vadd.f32 %v1073, %v1303
        %v1326 = vadd.f32 %v1074, %v1308
        %v1327 = vadd.f32 %v1075, %v1311
        %v1328 = vadd.f32 %v1076, %v1316
        %v1329 = vadd.f32 %v1077, %v1319
        %v1330 = vld [vmem:[#allocation2] sm:$0x80]
        %v1331 = vld [vmem:[#allocation2 + $0x20] sm:$0xff]
        %vm1332 = vsmask.f32 7424
        %v1333 = vrot.slane %v741, 1
        %v1334 = vor.u32 %v738, %v1333
        %v1335 = vrot.slane %v749, 1
        %v1336 = vsel %vm1332, %v1334, %v1335
        %v1337 = vor.u32 %v746, %v1335
        %v1338 = vrot.slane %v758, 1
        %v1339 = vsel %vm1332, %v1337, %v1338
        %v1340 = vor.u32 %v755, %v1338
        %v1341 = vrot.slane %v767, 1
        %v1342 = vsel %vm1332, %v1340, %v1341
        %v1343 = vor.u32 %v764, %v1341
        %vm1344 = vcmp.ne.s16.totalorder %v1333, 0
        %vm1345 = vcmp.ne.s16.totalorder %v1336, 0
        %vm1346 = vcmp.ne.s16.totalorder %v1339, 0
        %vm1347 = vcmp.ne.s16.totalorder %v1342, 0
        %vm1348 = vcmp.ne.s16.totalorder %v1343, 0
        %v1349 = vsel %vm1344, %v1330, 0
        %v1350 = vsel %vm1345, %v688, 0
        %v1351 = vsel %vm1346, %v689, 0
        %v1352 = vsel %vm1347, %v690, 0
        %v1353 = vsel %vm1348, %v1331, 0
        %s1354 = scalar_lea.vmem %s5, 96
        %v1355 = vld [vmem:[%s1354] sm:$0xf]
        %v1356 = vld [vmem:[%s1354 + $0x4] sm:$0xf]
        %v1357 = vld [vmem:[%s1354 + $0x8] sm:$0xf]
        %v1358 = vld [vmem:[%s1354 + $0xc] sm:$0xf]
        %v1359 = vld [vmem:[%s1354 + $0x10] sm:$0xf]
        %v1360 = vld [vmem:[%s1354 + $0x14] sm:$0xf]
        %v1361 = vld [vmem:[%s1354 + $0x18] sm:$0xf]
        %v1362 = vld [vmem:[%s1354 + $0x1c] sm:$0xf]
        %vm1363 = vsmask.f32 256
        %v1365 = vshrl.u32 %v1349, 16
        %v1367 = vrot.slane %v1365, 7
        %v1369 = vshrl.u32 %v1350, 16
        %v1371 = vrot.slane %v1369, 7
        %v1372 = vshll.u32 %v1350, 16
        %v1374 = vor.u32 %v1371, %v1372
        %v1375 = vsel %vm1363, %v1367, %v1374
        %v1377 = vshrl.u32 %v1351, 16
        %v1379 = vrot.slane %v1377, 7
        %v1380 = vshll.u32 %v1351, 16
        %v1382 = vor.u32 %v1379, %v1380
        %v1383 = vsel %vm1363, %v1371, %v1382
        %v1385 = vshrl.u32 %v1352, 16
        %v1387 = vrot.slane %v1385, 7
        %v1388 = vshll.u32 %v1352, 16
        %v1390 = vor.u32 %v1387, %v1388
        %v1391 = vsel %vm1363, %v1379, %v1390
        %v1393 = vshrl.u32 %v1353, 16
        %v1395 = vrot.slane %v1393, 7
        %v1396 = vshll.u32 %v1353, 16
        %v1398 = vor.u32 %v1395, %v1396
        %v1399 = vsel %vm1363, %v1387, %v1398
        %v1408 = vunpack.c.l.b16 %v1355
        %v1409 = vunpack.c.l.b16 %v1356
        %v1410 = vunpack.c.l.b16 %v1357
        %v1411 = vunpack.c.l.b16 %v1358
        %v1412 = vunpack.c.l.b16 %v1359
        %v1413 = vunpack.c.l.b16 %v1360
        %v1414 = vunpack.c.l.b16 %v1361
        %v1415 = vunpack.c.l.b16 %v1362
        %v1416 = vpack.c.b16 %v1409, %v1408
        %v1417 = vpack.c.b16 %v1411, %v1410
        %v1418 = vpack.c.b16 %v1413, %v1412
        %v1419 = vpack.c.b16 %v1415, %v1414
        %v1425 = vsel %vm535, %v1375, 0
        %v1428 = vsel %vm535, %v1383, 0
        %v1431 = vsel %vm535, %v1391, 0
        %v1434 = vsel %vm535, %v1399, 0
        %1436 = vmatprep.subr.bf16.mxu0 0
        %1437 = vmatpush1.bf16.msra.mxu0 %v1416
        %1438 = vmatprep.subr.bf16.mxu0 0
        %1439 = vmatpush1.bf16.msra.mxu0 %v1417
        %1440 = vmatprep.subr.bf16.mxu0 0
        %1441 = vmatpush1.bf16.msra.mxu0 %v1418
        %1442 = vmatprep.subr.bf16.mxu0 0
        %1443 = vmatpush1.bf16.msra.mxu0 %v1419
        %1444 = vmatprep.subr.bf16.mxu0 0
        %1445 = vmatpush1.bf16.msra.mxu0 0
        %1446 = vmatprep.subr.bf16.mxu0 0
        %1447 = vmatpush1.bf16.msra.mxu0 0
        %1448 = vmatprep.subr.bf16.mxu0 0
        %1449 = vmatpush1.bf16.msra.mxu0 0
        %1450 = vmatprep.subr.bf16.mxu0 0
        %1451 = vmatpush1.bf16.msra.mxu0 0
        %1452 = vmatprep.subr.bf16.mxu0 0
        %1453 = vmatpush1.bf16.msra.mxu0 0
        %1454 = vmatprep.subr.bf16.mxu0 0
        %1455 = vmatpush1.bf16.msra.mxu0 0
        %1456 = vmatprep.subr.bf16.mxu0 0
        %1457 = vmatpush1.bf16.msra.mxu0 0
        %1458 = vmatprep.subr.bf16.mxu0 0
        %1459 = vmatpush1.bf16.msra.mxu0 0
        %1460 = vmatprep.subr.bf16.mxu0 0
        %1461 = vmatpush1.bf16.msra.mxu0 0
        %1462 = vmatprep.subr.bf16.mxu0 0
        %1463 = vmatpush1.bf16.msra.mxu0 0
        %1464 = vmatprep.subr.bf16.mxu0 0
        %1465 = vmatpush1.bf16.msra.mxu0 0
        %1466 = vmatprep.subr.bf16.mxu0 0
        %1467 = vmatpush1.bf16.msra.mxu0 0
        %1468 = vmatprep.mubr.bf16.mxu0 0
        %1469 = vmatmul.mubr.bf16.gmra.mrb[0].mxu0 %v1425
        %v1470 = vpop.f32.mrb[0].mxu0
        %v1471 = vadd.f32 0.0, %v1470
        %v1472 = vpop.f32.mrb[0].mxu0
        %v1473 = vpop.f32.mrb[0].mxu0
        %v1474 = vadd.f32 0.0, %v1473
        %v1475 = vpop.f32.mrb[0].mxu0
        %1476 = vmatprep.mubr.bf16.mxu0 0
        %1477 = vmatmul.mubr.bf16.gmra.mrb[0].mxu0 %v1428
        %v1478 = vpop.f32.mrb[0].mxu0
        %v1479 = vadd.f32 0.0, %v1478
        %v1480 = vpop.f32.mrb[0].mxu0
        %v1481 = vpop.f32.mrb[0].mxu0
        %v1482 = vadd.f32 0.0, %v1481
        %v1483 = vpop.f32.mrb[0].mxu0
        %1484 = vmatprep.mubr.bf16.mxu0 0
        %1485 = vmatmul.mubr.bf16.gmra.mrb[0].mxu0 %v1431
        %v1486 = vpop.f32.mrb[0].mxu0
        %v1487 = vadd.f32 0.0, %v1486
        %v1488 = vpop.f32.mrb[0].mxu0
        %v1489 = vpop.f32.mrb[0].mxu0
        %v1490 = vadd.f32 0.0, %v1489
        %v1491 = vpop.f32.mrb[0].mxu0
        %1492 = vmatprep.mubr.bf16.mxu0 0
        %1493 = vmatmul.mubr.bf16.gmra.mrb[0].mxu0 %v1434
        %v1494 = vpop.f32.mrb[0].mxu0
        %v1495 = vadd.f32 0.0, %v1494
        %v1496 = vpop.f32.mrb[0].mxu0
        %v1497 = vpop.f32.mrb[0].mxu0
        %v1498 = vadd.f32 0.0, %v1497
        %v1499 = vpop.f32.mrb[0].mxu0
        %1500 = vdwg.mxu0
        %v1501 = vadd.f32 %v1322, %v1471
        %v1502 = vadd.f32 %v1323, %v1474
        %v1503 = vadd.f32 %v1324, %v1479
        %v1504 = vadd.f32 %v1325, %v1482
        %v1505 = vadd.f32 %v1326, %v1487
        %v1506 = vadd.f32 %v1327, %v1490
        %v1507 = vadd.f32 %v1328, %v1495
        %v1508 = vadd.f32 %v1329, %v1498
        %s1509 = scalar_lea.vmem %s5, 128
        %v1510 = vld [vmem:[%s1509] sm:$0xf]
        %v1511 = vld [vmem:[%s1509 + $0x4] sm:$0xf]
        %v1512 = vld [vmem:[%s1509 + $0x8] sm:$0xf]
        %v1513 = vld [vmem:[%s1509 + $0xc] sm:$0xf]
        %v1514 = vld [vmem:[%s1509 + $0x10] sm:$0xf]
        %v1515 = vld [vmem:[%s1509 + $0x14] sm:$0xf]
        %v1516 = vld [vmem:[%s1509 + $0x18] sm:$0xf]
        %v1517 = vld [vmem:[%s1509 + $0x1c] sm:$0xf]
        %v1526 = vunpack.c.l.b16 %v1510
        %v1527 = vunpack.c.l.b16 %v1511
        %v1528 = vunpack.c.l.b16 %v1512
        %v1529 = vunpack.c.l.b16 %v1513
        %v1530 = vunpack.c.l.b16 %v1514
        %v1531 = vunpack.c.l.b16 %v1515
        %v1532 = vunpack.c.l.b16 %v1516
        %v1533 = vunpack.c.l.b16 %v1517
        %v1534 = vpack.c.b16 %v1527, %v1526
        %v1535 = vpack.c.b16 %v1529, %v1528
        %v1536 = vpack.c.b16 %v1531, %v1530
        %v1537 = vpack.c.b16 %v1533, %v1532
        %v1543 = vsel %vm535, %v688, 0
        %v1546 = vsel %vm535, %v689, 0
        %v1549 = vsel %vm535, %v690, 0
        %v1552 = vsel %vm535, %v1331, 0
        %1554 = vmatprep.subr.bf16.mxu0 0
        %1555 = vmatpush1.bf16.msra.mxu0 %v1534
        %1556 = vmatprep.subr.bf16.mxu0 0
        %1557 = vmatpush1.bf16.msra.mxu0 %v1535
        %1558 = vmatprep.subr.bf16.mxu0 0
        %1559 = vmatpush1.bf16.msra.mxu0 %v1536
        %1560 = vmatprep.subr.bf16.mxu0 0
        %1561 = vmatpush1.bf16.msra.mxu0 %v1537
        %1562 = vmatprep.subr.bf16.mxu0 0
        %1563 = vmatpush1.bf16.msra.mxu0 0
        %1564 = vmatprep.subr.bf16.mxu0 0
        %1565 = vmatpush1.bf16.msra.mxu0 0
        %1566 = vmatprep.subr.bf16.mxu0 0
        %1567 = vmatpush1.bf16.msra.mxu0 0
        %1568 = vmatprep.subr.bf16.mxu0 0
        %1569 = vmatpush1.bf16.msra.mxu0 0
        %1570 = vmatprep.subr.bf16.mxu0 0
        %1571 = vmatpush1.bf16.msra.mxu0 0
        %1572 = vmatprep.subr.bf16.mxu0 0
        %1573 = vmatpush1.bf16.msra.mxu0 0
        %1574 = vmatprep.subr.bf16.mxu0 0
        %1575 = vmatpush1.bf16.msra.mxu0 0
        %1576 = vmatprep.subr.bf16.mxu0 0
        %1577 = vmatpush1.bf16.msra.mxu0 0
        %1578 = vmatprep.subr.bf16.mxu0 0
        %1579 = vmatpush1.bf16.msra.mxu0 0
        %1580 = vmatprep.subr.bf16.mxu0 0
        %1581 = vmatpush1.bf16.msra.mxu0 0
        %1582 = vmatprep.subr.bf16.mxu0 0
        %1583 = vmatpush1.bf16.msra.mxu0 0
        %1584 = vmatprep.subr.bf16.mxu0 0
        %1585 = vmatpush1.bf16.msra.mxu0 0
        %1586 = vmatprep.mubr.bf16.mxu0 0
        %1587 = vmatmul.mubr.bf16.gmra.mrb[0].mxu0 %v1543
        %v1588 = vpop.f32.mrb[0].mxu0
        %v1589 = vadd.f32 0.0, %v1588
        %v1590 = vpop.f32.mrb[0].mxu0
        %v1591 = vpop.f32.mrb[0].mxu0
        %v1592 = vadd.f32 0.0, %v1591
        %v1593 = vpop.f32.mrb[0].mxu0
        %1594 = vmatprep.mubr.bf16.mxu0 0
        %1595 = vmatmul.mubr.bf16.gmra.mrb[0].mxu0 %v1546
        %v1596 = vpop.f32.mrb[0].mxu0
        %v1597 = vadd.f32 0.0, %v1596
        %v1598 = vpop.f32.mrb[0].mxu0
        %v1599 = vpop.f32.mrb[0].mxu0
        %v1600 = vadd.f32 0.0, %v1599
        %v1601 = vpop.f32.mrb[0].mxu0
        %1602 = vmatprep.mubr.bf16.mxu0 0
        %1603 = vmatmul.mubr.bf16.gmra.mrb[0].mxu0 %v1549
        %v1604 = vpop.f32.mrb[0].mxu0
        %v1605 = vadd.f32 0.0, %v1604
        %v1606 = vpop.f32.mrb[0].mxu0
        %v1607 = vpop.f32.mrb[0].mxu0
        %v1608 = vadd.f32 0.0, %v1607
        %v1609 = vpop.f32.mrb[0].mxu0
        %1610 = vmatprep.mubr.bf16.mxu0 0
        %1611 = vmatmul.mubr.bf16.gmra.mrb[0].mxu0 %v1552
        %v1612 = vpop.f32.mrb[0].mxu0
        %v1613 = vadd.f32 0.0, %v1612
        %v1614 = vpop.f32.mrb[0].mxu0
        %v1615 = vpop.f32.mrb[0].mxu0
        %v1616 = vadd.f32 0.0, %v1615
        %v1617 = vpop.f32.mrb[0].mxu0
        %1618 = vdwg.mxu0
        %v1619 = vadd.f32 %v1501, %v1589
        %v1620 = vadd.f32 %v1502, %v1592
        %v1621 = vadd.f32 %v1503, %v1597
        %v1622 = vadd.f32 %v1504, %v1600
        %v1623 = vadd.f32 %v1505, %v1605
        %v1624 = vadd.f32 %v1506, %v1608
        %v1625 = vadd.f32 %v1507, %v1613
        %v1626 = vadd.f32 %v1508, %v1616
        %v1627 = vld [vmem:[#allocation2 + $0x8] sm:$0xff]
        %v1628 = vld [vmem:[#allocation2 + $0x10] sm:$0xff]
        %v1629 = vld [vmem:[#allocation2 + $0x18] sm:$0xff]
        %v1630 = vld [vmem:[#allocation2 + $0x20] sm:$0xff]
        %v1631 = vld [vmem:[#allocation2 + $0x28] sm:$0x1]
        %v1632 = vrot.slane %v1124, 7
        %v1633 = vor.u32 %v1632, %v1127
        %v1634 = vrot.slane %v1132, 7
        %v1635 = vor.u32 %v1634, %v1135
        %v1636 = vsel %vm1363, %v1632, %v1635
        %v1637 = vrot.slane %v1141, 7
        %v1638 = vor.u32 %v1637, %v1144
        %v1639 = vsel %vm1363, %v1634, %v1638
        %v1640 = vrot.slane %v1150, 7
        %v1641 = vor.u32 %v1640, %v1153
        %v1642 = vsel %vm1363, %v1637, %v1641
        %vm1643 = vcmp.ne.s16.totalorder %v1633, 0
        %vm1644 = vcmp.ne.s16.totalorder %v1636, 0
        %vm1645 = vcmp.ne.s16.totalorder %v1639, 0
        %vm1646 = vcmp.ne.s16.totalorder %v1642, 0
        %vm1647 = vcmp.ne.s16.totalorder %v1640, 0
        %v1648 = vsel %vm1643, %v1627, 0
        %v1649 = vsel %vm1644, %v1628, 0
        %v1650 = vsel %vm1645, %v1629, 0
        %v1651 = vsel %vm1646, %v1630, 0
        %v1652 = vsel %vm1647, %v1631, 0
        %s1653 = scalar_lea.vmem %s5, 160
        %v1654 = vld [vmem:[%s1653] sm:$0xf]
        %v1655 = vld [vmem:[%s1653 + $0x4] sm:$0xf]
        %v1656 = vld [vmem:[%s1653 + $0x8] sm:$0xf]
        %v1657 = vld [vmem:[%s1653 + $0xc] sm:$0xf]
        %v1658 = vld [vmem:[%s1653 + $0x10] sm:$0xf]
        %v1659 = vld [vmem:[%s1653 + $0x14] sm:$0xf]
        %v1660 = vld [vmem:[%s1653 + $0x18] sm:$0xf]
        %v1661 = vld [vmem:[%s1653 + $0x1c] sm:$0xf]
        %v1663 = vshrl.u32 %v1648, 16
        %v1665 = vshll.u32 %v1648, 16
        %v1667 = vrot.slane %v1665, 1
        %v1668 = vor.u32 %v1663, %v1667
        %v1670 = vshll.u32 %v1649, 16
        %v1672 = vrot.slane %v1670, 1
        %v1673 = vsel %vm1332, %v1668, %v1672
        %v1674 = vshrl.u32 %v1649, 16
        %v1676 = vor.u32 %v1674, %v1672
        %v1678 = vshll.u32 %v1650, 16
        %v1680 = vrot.slane %v1678, 1
        %v1681 = vsel %vm1332, %v1676, %v1680
        %v1682 = vshrl.u32 %v1650, 16
        %v1684 = vor.u32 %v1682, %v1680
        %v1686 = vshll.u32 %v1651, 16
        %v1688 = vrot.slane %v1686, 1
        %v1689 = vsel %vm1332, %v1684, %v1688
        %v1690 = vshrl.u32 %v1651, 16
        %v1692 = vor.u32 %v1690, %v1688
        %v1694 = vshll.u32 %v1652, 16
        %v1696 = vrot.slane %v1694, 1
        %v1697 = vsel %vm1332, %v1692, %v1696
        %v1706 = vunpack.c.l.b16 %v1654
        %v1707 = vunpack.c.l.b16 %v1655
        %v1708 = vunpack.c.l.b16 %v1656
        %v1709 = vunpack.c.l.b16 %v1657
        %v1710 = vunpack.c.l.b16 %v1658
        %v1711 = vunpack.c.l.b16 %v1659
        %v1712 = vunpack.c.l.b16 %v1660
        %v1713 = vunpack.c.l.b16 %v1661
        %v1714 = vpack.c.b16 %v1707, %v1706
        %v1715 = vpack.c.b16 %v1709, %v1708
        %v1716 = vpack.c.b16 %v1711, %v1710
        %v1717 = vpack.c.b16 %v1713, %v1712
        %v1723 = vsel %vm535, %v1673, 0
        %v1726 = vsel %vm535, %v1681, 0
        %v1729 = vsel %vm535, %v1689, 0
        %v1732 = vsel %vm535, %v1697, 0
        %1734 = vmatprep.subr.bf16.mxu0 0
        %1735 = vmatpush1.bf16.msra.mxu0 %v1714
        %1736 = vmatprep.subr.bf16.mxu0 0
        %1737 = vmatpush1.bf16.msra.mxu0 %v1715
        %1738 = vmatprep.subr.bf16.mxu0 0
        %1739 = vmatpush1.bf16.msra.mxu0 %v1716
        %1740 = vmatprep.subr.bf16.mxu0 0
        %1741 = vmatpush1.bf16.msra.mxu0 %v1717
        %1742 = vmatprep.subr.bf16.mxu0 0
        %1743 = vmatpush1.bf16.msra.mxu0 0
        %1744 = vmatprep.subr.bf16.mxu0 0
        %1745 = vmatpush1.bf16.msra.mxu0 0
        %1746 = vmatprep.subr.bf16.mxu0 0
        %1747 = vmatpush1.bf16.msra.mxu0 0
        %1748 = vmatprep.subr.bf16.mxu0 0
        %1749 = vmatpush1.bf16.msra.mxu0 0
        %1750 = vmatprep.subr.bf16.mxu0 0
        %1751 = vmatpush1.bf16.msra.mxu0 0
        %1752 = vmatprep.subr.bf16.mxu0 0
        %1753 = vmatpush1.bf16.msra.mxu0 0
        %1754 = vmatprep.subr.bf16.mxu0 0
        %1755 = vmatpush1.bf16.msra.mxu0 0
        %1756 = vmatprep.subr.bf16.mxu0 0
        %1757 = vmatpush1.bf16.msra.mxu0 0
        %1758 = vmatprep.subr.bf16.mxu0 0
        %1759 = vmatpush1.bf16.msra.mxu0 0
        %1760 = vmatprep.subr.bf16.mxu0 0
        %1761 = vmatpush1.bf16.msra.mxu0 0
        %1762 = vmatprep.subr.bf16.mxu0 0
        %1763 = vmatpush1.bf16.msra.mxu0 0
        %1764 = vmatprep.subr.bf16.mxu0 0
        %1765 = vmatpush1.bf16.msra.mxu0 0
        %1766 = vmatprep.mubr.bf16.mxu0 0
        %1767 = vmatmul.mubr.bf16.gmra.mrb[0].mxu0 %v1723
        %v1768 = vpop.f32.mrb[0].mxu0
        %v1769 = vadd.f32 0.0, %v1768
        %v1770 = vpop.f32.mrb[0].mxu0
        %v1771 = vpop.f32.mrb[0].mxu0
        %v1772 = vadd.f32 0.0, %v1771
        %v1773 = vpop.f32.mrb[0].mxu0
        %1774 = vmatprep.mubr.bf16.mxu0 0
        %1775 = vmatmul.mubr.bf16.gmra.mrb[0].mxu0 %v1726
        %v1776 = vpop.f32.mrb[0].mxu0
        %v1777 = vadd.f32 0.0, %v1776
        %v1778 = vpop.f32.mrb[0].mxu0
        %v1779 = vpop.f32.mrb[0].mxu0
        %v1780 = vadd.f32 0.0, %v1779
        %v1781 = vpop.f32.mrb[0].mxu0
        %1782 = vmatprep.mubr.bf16.mxu0 0
        %1783 = vmatmul.mubr.bf16.gmra.mrb[0].mxu0 %v1729
        %v1784 = vpop.f32.mrb[0].mxu0
        %v1785 = vadd.f32 0.0, %v1784
        %v1786 = vpop.f32.mrb[0].mxu0
        %v1787 = vpop.f32.mrb[0].mxu0
        %v1788 = vadd.f32 0.0, %v1787
        %v1789 = vpop.f32.mrb[0].mxu0
        %1790 = vmatprep.mubr.bf16.mxu0 0
        %1791 = vmatmul.mubr.bf16.gmra.mrb[0].mxu0 %v1732
        %v1792 = vpop.f32.mrb[0].mxu0
        %v1793 = vadd.f32 0.0, %v1792
        %v1794 = vpop.f32.mrb[0].mxu0
        %v1795 = vpop.f32.mrb[0].mxu0
        %v1796 = vadd.f32 0.0, %v1795
        %v1797 = vpop.f32.mrb[0].mxu0
        %1798 = vdwg.mxu0
        %v1799 = vadd.f32 %v1619, %v1769
        %v1800 = vadd.f32 %v1620, %v1772
        %v1801 = vadd.f32 %v1621, %v1777
        %v1802 = vadd.f32 %v1622, %v1780
        %v1803 = vadd.f32 %v1623, %v1785
        %v1804 = vadd.f32 %v1624, %v1788
        %v1805 = vadd.f32 %v1625, %v1793
        %v1806 = vadd.f32 %v1626, %v1796
        %v1807 = vld [vmem:[#allocation2 + $0x8] sm:$0xf8]
        %v1808 = vld [vmem:[#allocation2 + $0x28] sm:$0xf]
        %v1809 = vsel %vm772, %v1807, 0
        %v1810 = vsel %vm773, %v1628, 0
        %v1811 = vsel %vm774, %v1629, 0
        %v1812 = vsel %vm775, %v1630, 0
        %v1813 = vsel %vm776, %v1808, 0
        %s1814 = scalar_lea.vmem %s5, 192
        %v1815 = vld [vmem:[%s1814] sm:$0xf]
        %v1816 = vld [vmem:[%s1814 + $0x4] sm:$0xf]
        %v1817 = vld [vmem:[%s1814 + $0x8] sm:$0xf]
        %v1818 = vld [vmem:[%s1814 + $0xc] sm:$0xf]
        %v1819 = vld [vmem:[%s1814 + $0x10] sm:$0xf]
        %v1820 = vld [vmem:[%s1814 + $0x14] sm:$0xf]
        %v1821 = vld [vmem:[%s1814 + $0x18] sm:$0xf]
        %v1822 = vld [vmem:[%s1814 + $0x1c] sm:$0xf]
        %v1824 = vshrl.u32 %v1809, 16
        %v1826 = vrot.slane %v1824, 3
        %v1827 = vshll.u32 %v1809, 16
        %v1829 = vrot.slane %v1827, 4
        %v1830 = vor.u32 %v1826, %v1829
        %v1832 = vshrl.u32 %v1810, 16
        %v1834 = vrot.slane %v1832, 3
        %v1835 = vshll.u32 %v1810, 16
        %v1837 = vrot.slane %v1835, 4
        %v1838 = vor.u32 %v1834, %v1837
        %v1839 = vsel %vm790, %v1830, %v1838
        %v1841 = vshrl.u32 %v1811, 16
        %v1843 = vrot.slane %v1841, 3
        %v1844 = vshll.u32 %v1811, 16
        %v1846 = vrot.slane %v1844, 4
        %v1847 = vor.u32 %v1843, %v1846
        %v1848 = vsel %vm790, %v1838, %v1847
        %v1850 = vshrl.u32 %v1812, 16
        %v1852 = vrot.slane %v1850, 3
        %v1853 = vshll.u32 %v1812, 16
        %v1855 = vrot.slane %v1853, 4
        %v1856 = vor.u32 %v1852, %v1855
        %v1857 = vsel %vm790, %v1847, %v1856
        %v1859 = vshrl.u32 %v1813, 16
        %v1861 = vrot.slane %v1859, 3
        %v1862 = vshll.u32 %v1813, 16
        %v1864 = vrot.slane %v1862, 4
        %v1865 = vor.u32 %v1861, %v1864
        %v1866 = vsel %vm790, %v1856, %v1865
        %v1875 = vunpack.c.l.b16 %v1815
        %v1876 = vunpack.c.l.b16 %v1816
        %v1877 = vunpack.c.l.b16 %v1817
        %v1878 = vunpack.c.l.b16 %v1818
        %v1879 = vunpack.c.l.b16 %v1819
        %v1880 = vunpack.c.l.b16 %v1820
        %v1881 = vunpack.c.l.b16 %v1821
        %v1882 = vunpack.c.l.b16 %v1822
        %v1883 = vpack.c.b16 %v1876, %v1875
        %v1884 = vpack.c.b16 %v1878, %v1877
        %v1885 = vpack.c.b16 %v1880, %v1879
        %v1886 = vpack.c.b16 %v1882, %v1881
        %v1892 = vsel %vm535, %v1839, 0
        %v1895 = vsel %vm535, %v1848, 0
        %v1898 = vsel %vm535, %v1857, 0
        %v1901 = vsel %vm535, %v1866, 0
        %1903 = vmatprep.subr.bf16.mxu0 0
        %1904 = vmatpush1.bf16.msra.mxu0 %v1883
        %1905 = vmatprep.subr.bf16.mxu0 0
        %1906 = vmatpush1.bf16.msra.mxu0 %v1884
        %1907 = vmatprep.subr.bf16.mxu0 0
        %1908 = vmatpush1.bf16.msra.mxu0 %v1885
        %1909 = vmatprep.subr.bf16.mxu0 0
        %1910 = vmatpush1.bf16.msra.mxu0 %v1886
        %1911 = vmatprep.subr.bf16.mxu0 0
        %1912 = vmatpush1.bf16.msra.mxu0 0
        %1913 = vmatprep.subr.bf16.mxu0 0
        %1914 = vmatpush1.bf16.msra.mxu0 0
        %1915 = vmatprep.subr.bf16.mxu0 0
        %1916 = vmatpush1.bf16.msra.mxu0 0
        %1917 = vmatprep.subr.bf16.mxu0 0
        %1918 = vmatpush1.bf16.msra.mxu0 0
        %1919 = vmatprep.subr.bf16.mxu0 0
        %1920 = vmatpush1.bf16.msra.mxu0 0
        %1921 = vmatprep.subr.bf16.mxu0 0
        %1922 = vmatpush1.bf16.msra.mxu0 0
        %1923 = vmatprep.subr.bf16.mxu0 0
        %1924 = vmatpush1.bf16.msra.mxu0 0
        %1925 = vmatprep.subr.bf16.mxu0 0
        %1926 = vmatpush1.bf16.msra.mxu0 0
        %1927 = vmatprep.subr.bf16.mxu0 0
        %1928 = vmatpush1.bf16.msra.mxu0 0
        %1929 = vmatprep.subr.bf16.mxu0 0
        %1930 = vmatpush1.bf16.msra.mxu0 0
        %1931 = vmatprep.subr.bf16.mxu0 0
        %1932 = vmatpush1.bf16.msra.mxu0 0
        %1933 = vmatprep.subr.bf16.mxu0 0
        %1934 = vmatpush1.bf16.msra.mxu0 0
        %1935 = vmatprep.mubr.bf16.mxu0 0
        %1936 = vmatmul.mubr.bf16.gmra.mrb[0].mxu0 %v1892
        %v1937 = vpop.f32.mrb[0].mxu0
        %v1938 = vadd.f32 0.0, %v1937
        %v1939 = vpop.f32.mrb[0].mxu0
        %v1940 = vpop.f32.mrb[0].mxu0
        %v1941 = vadd.f32 0.0, %v1940
        %v1942 = vpop.f32.mrb[0].mxu0
        %1943 = vmatprep.mubr.bf16.mxu0 0
        %1944 = vmatmul.mubr.bf16.gmra.mrb[0].mxu0 %v1895
        %v1945 = vpop.f32.mrb[0].mxu0
        %v1946 = vadd.f32 0.0, %v1945
        %v1947 = vpop.f32.mrb[0].mxu0
        %v1948 = vpop.f32.mrb[0].mxu0
        %v1949 = vadd.f32 0.0, %v1948
        %v1950 = vpop.f32.mrb[0].mxu0
        %1951 = vmatprep.mubr.bf16.mxu0 0
        %1952 = vmatmul.mubr.bf16.gmra.mrb[0].mxu0 %v1898
        %v1953 = vpop.f32.mrb[0].mxu0
        %v1954 = vadd.f32 0.0, %v1953
        %v1955 = vpop.f32.mrb[0].mxu0
        %v1956 = vpop.f32.mrb[0].mxu0
        %v1957 = vadd.f32 0.0, %v1956
        %v1958 = vpop.f32.mrb[0].mxu0
        %1959 = vmatprep.mubr.bf16.mxu0 0
        %1960 = vmatmul.mubr.bf16.gmra.mrb[0].mxu0 %v1901
        %v1961 = vpop.f32.mrb[0].mxu0
        %v1962 = vadd.f32 0.0, %v1961
        %v1963 = vpop.f32.mrb[0].mxu0
        %v1964 = vpop.f32.mrb[0].mxu0
        %v1965 = vadd.f32 0.0, %v1964
        %v1966 = vpop.f32.mrb[0].mxu0
        %1967 = vdwg.mxu0
        %v1968 = vadd.f32 %v1799, %v1938
        %v1969 = vadd.f32 %v1800, %v1941
        %v1970 = vadd.f32 %v1801, %v1946
        %v1971 = vadd.f32 %v1802, %v1949
        %v1972 = vadd.f32 %v1803, %v1954
        %v1973 = vadd.f32 %v1804, %v1957
        %v1974 = vadd.f32 %v1805, %v1962
        %v1975 = vadd.f32 %v1806, %v1965
        %v1976 = vld [vmem:[#allocation2 + $0x8] sm:$0xf0]
        %s1977 = scalar_lea.vmem %s5, 224
        %v1978 = vld [vmem:[%s1977] sm:$0xf]
        %v1979 = vld [vmem:[%s1977 + $0x4] sm:$0xf]
        %v1980 = vld [vmem:[%s1977 + $0x8] sm:$0xf]
        %v1981 = vld [vmem:[%s1977 + $0xc] sm:$0xf]
        %v1982 = vld [vmem:[%s1977 + $0x10] sm:$0xf]
        %v1983 = vld [vmem:[%s1977 + $0x14] sm:$0xf]
        %v1984 = vld [vmem:[%s1977 + $0x18] sm:$0xf]
        %v1985 = vld [vmem:[%s1977 + $0x1c] sm:$0xf]
        %v1991 = vrot.slane %v1976, 4
        %v1992 = vrot.slane %v1628, 4
        %v1993 = vsel %vm959, %v1991, %v1992
        %v1994 = vrot.slane %v1629, 4
        %v1995 = vsel %vm959, %v1992, %v1994
        %v1996 = vrot.slane %v1630, 4
        %v1997 = vsel %vm959, %v1994, %v1996
        %v1998 = vrot.slane %v1808, 4
        %v1999 = vsel %vm959, %v1996, %v1998
        %v2008 = vunpack.c.l.b16 %v1978
        %v2009 = vunpack.c.l.b16 %v1979
        %v2010 = vunpack.c.l.b16 %v1980
        %v2011 = vunpack.c.l.b16 %v1981
        %v2012 = vunpack.c.l.b16 %v1982
        %v2013 = vunpack.c.l.b16 %v1983
        %v2014 = vunpack.c.l.b16 %v1984
        %v2015 = vunpack.c.l.b16 %v1985
        %v2016 = vpack.c.b16 %v2009, %v2008
        %v2017 = vpack.c.b16 %v2011, %v2010
        %v2018 = vpack.c.b16 %v2013, %v2012
        %v2019 = vpack.c.b16 %v2015, %v2014
        %v2025 = vsel %vm535, %v1993, 0
        %v2028 = vsel %vm535, %v1995, 0
        %v2031 = vsel %vm535, %v1997, 0
        %v2034 = vsel %vm535, %v1999, 0
        %2036 = vmatprep.subr.bf16.mxu0 0
        %2037 = vmatpush1.bf16.msra.mxu0 %v2016
        %2038 = vmatprep.subr.bf16.mxu0 0
        %2039 = vmatpush1.bf16.msra.mxu0 %v2017
        %2040 = vmatprep.subr.bf16.mxu0 0
        %2041 = vmatpush1.bf16.msra.mxu0 %v2018
        %2042 = vmatprep.subr.bf16.mxu0 0
        %2043 = vmatpush1.bf16.msra.mxu0 %v2019
        %2044 = vmatprep.subr.bf16.mxu0 0
        %2045 = vmatpush1.bf16.msra.mxu0 0
        %2046 = vmatprep.subr.bf16.mxu0 0
        %2047 = vmatpush1.bf16.msra.mxu0 0
        %2048 = vmatprep.subr.bf16.mxu0 0
        %2049 = vmatpush1.bf16.msra.mxu0 0
        %2050 = vmatprep.subr.bf16.mxu0 0
        %2051 = vmatpush1.bf16.msra.mxu0 0
        %2052 = vmatprep.subr.bf16.mxu0 0
        %2053 = vmatpush1.bf16.msra.mxu0 0
        %2054 = vmatprep.subr.bf16.mxu0 0
        %2055 = vmatpush1.bf16.msra.mxu0 0
        %2056 = vmatprep.subr.bf16.mxu0 0
        %2057 = vmatpush1.bf16.msra.mxu0 0
        %2058 = vmatprep.subr.bf16.mxu0 0
        %2059 = vmatpush1.bf16.msra.mxu0 0
        %2060 = vmatprep.subr.bf16.mxu0 0
        %2061 = vmatpush1.bf16.msra.mxu0 0
        %2062 = vmatprep.subr.bf16.mxu0 0
        %2063 = vmatpush1.bf16.msra.mxu0 0
        %2064 = vmatprep.subr.bf16.mxu0 0
        %2065 = vmatpush1.bf16.msra.mxu0 0
        %2066 = vmatprep.subr.bf16.mxu0 0
        %2067 = vmatpush1.bf16.msra.mxu0 0
        %2068 = vmatprep.mubr.bf16.mxu0 0
        %2069 = vmatmul.mubr.bf16.gmra.mrb[0].mxu0 %v2025
        %v2070 = vpop.f32.mrb[0].mxu0
        %v2071 = vadd.f32 0.0, %v2070
        %v2072 = vpop.f32.mrb[0].mxu0
        %v2073 = vpop.f32.mrb[0].mxu0
        %v2074 = vadd.f32 0.0, %v2073
        %v2075 = vpop.f32.mrb[0].mxu0
        %2076 = vmatprep.mubr.bf16.mxu0 0
        %2077 = vmatmul.mubr.bf16.gmra.mrb[0].mxu0 %v2028
        %v2078 = vpop.f32.mrb[0].mxu0
        %v2079 = vadd.f32 0.0, %v2078
        %v2080 = vpop.f32.mrb[0].mxu0
        %v2081 = vpop.f32.mrb[0].mxu0
        %v2082 = vadd.f32 0.0, %v2081
        %v2083 = vpop.f32.mrb[0].mxu0
        %2084 = vmatprep.mubr.bf16.mxu0 0
        %2085 = vmatmul.mubr.bf16.gmra.mrb[0].mxu0 %v2031
        %v2086 = vpop.f32.mrb[0].mxu0
        %v2087 = vadd.f32 0.0, %v2086
        %v2088 = vpop.f32.mrb[0].mxu0
        %v2089 = vpop.f32.mrb[0].mxu0
        %v2090 = vadd.f32 0.0, %v2089
        %v2091 = vpop.f32.mrb[0].mxu0
        %2092 = vmatprep.mubr.bf16.mxu0 0
        %2093 = vmatmul.mubr.bf16.gmra.mrb[0].mxu0 %v2034
        %v2094 = vpop.f32.mrb[0].mxu0
        %v2095 = vadd.f32 0.0, %v2094
        %v2096 = vpop.f32.mrb[0].mxu0
        %v2097 = vpop.f32.mrb[0].mxu0
        %v2098 = vadd.f32 0.0, %v2097
        %v2099 = vpop.f32.mrb[0].mxu0
        %2100 = vdwg.mxu0
        %v2101 = vadd.f32 %v1968, %v2071
        %v2102 = vadd.f32 %v1969, %v2074
        %v2103 = vadd.f32 %v1970, %v2079
        %v2104 = vadd.f32 %v1971, %v2082
        %v2105 = vadd.f32 %v1972, %v2087
        %v2106 = vadd.f32 %v1973, %v2090
        %v2107 = vadd.f32 %v1974, %v2095
        %v2108 = vadd.f32 %v1975, %v2098
        %v2109 = vld [vmem:[#allocation2 + $0x28] sm:$0x1f]
        %v2110 = vsel %vm1158, %v1976, 0
        %v2111 = vsel %vm1159, %v1628, 0
        %v2112 = vsel %vm1160, %v1629, 0
        %v2113 = vsel %vm1161, %v1630, 0
        %v2114 = vsel %vm1162, %v2109, 0
        %s2115 = scalar_lea.vmem %s5, 256
        %v2116 = vld [vmem:[%s2115] sm:$0xf]
        %v2117 = vld [vmem:[%s2115 + $0x4] sm:$0xf]
        %v2118 = vld [vmem:[%s2115 + $0x8] sm:$0xf]
        %v2119 = vld [vmem:[%s2115 + $0xc] sm:$0xf]
        %v2120 = vld [vmem:[%s2115 + $0x10] sm:$0xf]
        %v2121 = vld [vmem:[%s2115 + $0x14] sm:$0xf]
        %v2122 = vld [vmem:[%s2115 + $0x18] sm:$0xf]
        %v2123 = vld [vmem:[%s2115 + $0x1c] sm:$0xf]
        %v2125 = vshrl.u32 %v2110, 16
        %v2127 = vrot.slane %v2125, 4
        %v2128 = vshll.u32 %v2110, 16
        %v2130 = vrot.slane %v2128, 5
        %v2131 = vor.u32 %v2127, %v2130
        %v2133 = vshrl.u32 %v2111, 16
        %v2135 = vrot.slane %v2133, 4
        %v2136 = vshll.u32 %v2111, 16
        %v2138 = vrot.slane %v2136, 5
        %v2139 = vor.u32 %v2135, %v2138
        %v2140 = vsel %vm736, %v2131, %v2139
        %v2142 = vshrl.u32 %v2112, 16
        %v2144 = vrot.slane %v2142, 4
        %v2145 = vshll.u32 %v2112, 16
        %v2147 = vrot.slane %v2145, 5
        %v2148 = vor.u32 %v2144, %v2147
        %v2149 = vsel %vm736, %v2139, %v2148
        %v2151 = vshrl.u32 %v2113, 16
        %v2153 = vrot.slane %v2151, 4
        %v2154 = vshll.u32 %v2113, 16
        %v2156 = vrot.slane %v2154, 5
        %v2157 = vor.u32 %v2153, %v2156
        %v2158 = vsel %vm736, %v2148, %v2157
        %v2160 = vshrl.u32 %v2114, 16
        %v2162 = vrot.slane %v2160, 4
        %v2163 = vshll.u32 %v2114, 16
        %v2165 = vrot.slane %v2163, 5
        %v2166 = vor.u32 %v2162, %v2165
        %v2167 = vsel %vm736, %v2157, %v2166
        %v2176 = vunpack.c.l.b16 %v2116
        %v2177 = vunpack.c.l.b16 %v2117
        %v2178 = vunpack.c.l.b16 %v2118
        %v2179 = vunpack.c.l.b16 %v2119
        %v2180 = vunpack.c.l.b16 %v2120
        %v2181 = vunpack.c.l.b16 %v2121
        %v2182 = vunpack.c.l.b16 %v2122
        %v2183 = vunpack.c.l.b16 %v2123
        %v2184 = vpack.c.b16 %v2177, %v2176
        %v2185 = vpack.c.b16 %v2179, %v2178
        %v2186 = vpack.c.b16 %v2181, %v2180
        %v2187 = vpack.c.b16 %v2183, %v2182
        %v2193 = vsel %vm535, %v2140, 0
        %v2196 = vsel %vm535, %v2149, 0
        %v2199 = vsel %vm535, %v2158, 0
        %v2202 = vsel %vm535, %v2167, 0
        %2204 = vmatprep.subr.bf16.mxu0 0
        %2205 = vmatpush1.bf16.msra.mxu0 %v2184
        %2206 = vmatprep.subr.bf16.mxu0 0
        %2207 = vmatpush1.bf16.msra.mxu0 %v2185
        %2208 = vmatprep.subr.bf16.mxu0 0
        %2209 = vmatpush1.bf16.msra.mxu0 %v2186
        %2210 = vmatprep.subr.bf16.mxu0 0
        %2211 = vmatpush1.bf16.msra.mxu0 %v2187
        %2212 = vmatprep.subr.bf16.mxu0 0
        %2213 = vmatpush1.bf16.msra.mxu0 0
        %2214 = vmatprep.subr.bf16.mxu0 0
        %2215 = vmatpush1.bf16.msra.mxu0 0
        %2216 = vmatprep.subr.bf16.mxu0 0
        %2217 = vmatpush1.bf16.msra.mxu0 0
        %2218 = vmatprep.subr.bf16.mxu0 0
        %2219 = vmatpush1.bf16.msra.mxu0 0
        %2220 = vmatprep.subr.bf16.mxu0 0
        %2221 = vmatpush1.bf16.msra.mxu0 0
        %2222 = vmatprep.subr.bf16.mxu0 0
        %2223 = vmatpush1.bf16.msra.mxu0 0
        %2224 = vmatprep.subr.bf16.mxu0 0
        %2225 = vmatpush1.bf16.msra.mxu0 0
        %2226 = vmatprep.subr.bf16.mxu0 0
        %2227 = vmatpush1.bf16.msra.mxu0 0
        %2228 = vmatprep.subr.bf16.mxu0 0
        %2229 = vmatpush1.bf16.msra.mxu0 0
        %2230 = vmatprep.subr.bf16.mxu0 0
        %2231 = vmatpush1.bf16.msra.mxu0 0
        %2232 = vmatprep.subr.bf16.mxu0 0
        %2233 = vmatpush1.bf16.msra.mxu0 0
        %2234 = vmatprep.subr.bf16.mxu0 0
        %2235 = vmatpush1.bf16.msra.mxu0 0
        %2236 = vmatprep.mubr.bf16.mxu0 0
        %2237 = vmatmul.mubr.bf16.gmra.mrb[0].mxu0 %v2193
        %v2238 = vpop.f32.mrb[0].mxu0
        %v2239 = vadd.f32 0.0, %v2238
        %v2240 = vpop.f32.mrb[0].mxu0
        %v2241 = vpop.f32.mrb[0].mxu0
        %v2242 = vadd.f32 0.0, %v2241
        %v2243 = vpop.f32.mrb[0].mxu0
        %2244 = vmatprep.mubr.bf16.mxu0 0
        %2245 = vmatmul.mubr.bf16.gmra.mrb[0].mxu0 %v2196
        %v2246 = vpop.f32.mrb[0].mxu0
        %v2247 = vadd.f32 0.0, %v2246
        %v2248 = vpop.f32.mrb[0].mxu0
        %v2249 = vpop.f32.mrb[0].mxu0
        %v2250 = vadd.f32 0.0, %v2249
        %v2251 = vpop.f32.mrb[0].mxu0
        %2252 = vmatprep.mubr.bf16.mxu0 0
        %2253 = vmatmul.mubr.bf16.gmra.mrb[0].mxu0 %v2199
        %v2254 = vpop.f32.mrb[0].mxu0
        %v2255 = vadd.f32 0.0, %v2254
        %v2256 = vpop.f32.mrb[0].mxu0
        %v2257 = vpop.f32.mrb[0].mxu0
        %v2258 = vadd.f32 0.0, %v2257
        %v2259 = vpop.f32.mrb[0].mxu0
        %2260 = vmatprep.mubr.bf16.mxu0 0
        %2261 = vmatmul.mubr.bf16.gmra.mrb[0].mxu0 %v2202
        %v2262 = vpop.f32.mrb[0].mxu0
        %v2263 = vadd.f32 0.0, %v2262
        %v2264 = vpop.f32.mrb[0].mxu0
        %v2265 = vpop.f32.mrb[0].mxu0
        %v2266 = vadd.f32 0.0, %v2265
        %v2267 = vpop.f32.mrb[0].mxu0
        %2268 = vdwg.mxu0
        %v2269 = vadd.f32 %v2101, %v2239
        %v2270 = vadd.f32 %v2102, %v2242
        %v2271 = vadd.f32 %v2103, %v2247
        %v2272 = vadd.f32 %v2104, %v2250
        %v2273 = vadd.f32 %v2105, %v2255
        %v2274 = vadd.f32 %v2106, %v2258
        %v2275 = vadd.f32 %v2107, %v2263
        %v2276 = vadd.f32 %v2108, %v2266
        %v2277 = vmax.f32 %v2269, 0.0
        %v2278 = vmax.f32 %v2270, 0.0
        %v2279 = vmax.f32 %v2271, 0.0
        %v2280 = vmax.f32 %v2272, 0.0
        %v2281 = vmax.f32 %v2273, 0.0
        %v2282 = vmax.f32 %v2274, 0.0
        %v2283 = vmax.f32 %v2275, 0.0
        %v2284 = vmax.f32 %v2276, 0.0
        %v2285 = vpack.c.bf16 %v2278, %v2277
        %v2286 = vpack.c.bf16 %v2280, %v2279
        %v2287 = vpack.c.bf16 %v2282, %v2281
        %v2288 = vpack.c.bf16 %v2284, %v2283
        %v2289 = vld [vmem:[%s7] sm:$0xf]
        %v2290 = vld [vmem:[%s7 + $0x4] sm:$0xf]
        %v2291 = vld [vmem:[%s7 + $0x8] sm:$0xf]
        %v2292 = vld [vmem:[%s7 + $0xc] sm:$0xf]
        %v2293 = vld [vmem:[%s7 + $0x10] sm:$0xf]
        %v2294 = vld [vmem:[%s7 + $0x14] sm:$0xf]
        %v2295 = vld [vmem:[%s7 + $0x18] sm:$0xf]
        %v2296 = vld [vmem:[%s7 + $0x1c] sm:$0xf]
        %v2297 = vld [vmem:[%s8] sm:$0x1]
        %v2299 = vlaneseq
        %v2300 = vshrl.u32 %v2299, 7
        %v2301 = vsub.s32 0, %v2300
        %v2302 = vrot.slane %v2297, %v2301
        %v2312 = vunpack.c.l.b16 %v2289
        %v2313 = vunpack.c.l.b16 %v2290
        %v2314 = vunpack.c.l.b16 %v2291
        %v2315 = vunpack.c.l.b16 %v2292
        %v2316 = vunpack.c.l.b16 %v2293
        %v2317 = vunpack.c.l.b16 %v2294
        %v2318 = vunpack.c.l.b16 %v2295
        %v2319 = vunpack.c.l.b16 %v2296
        %v2320 = vpack.c.b16 %v2313, %v2312
        %v2321 = vpack.c.b16 %v2315, %v2314
        %v2322 = vpack.c.b16 %v2317, %v2316
        %v2323 = vpack.c.b16 %v2319, %v2318
        %v2329 = vsel %vm535, %v2285, 0
        %v2332 = vsel %vm535, %v2286, 0
        %v2335 = vsel %vm535, %v2287, 0
        %v2338 = vsel %vm535, %v2288, 0
        %2340 = vmatprep.subr.bf16.mxu0 0
        %2341 = vmatpush1.bf16.msra.mxu0 %v2320
        %2342 = vmatprep.subr.bf16.mxu0 0
        %2343 = vmatpush1.bf16.msra.mxu0 %v2321
        %2344 = vmatprep.subr.bf16.mxu0 0
        %2345 = vmatpush1.bf16.msra.mxu0 %v2322
        %2346 = vmatprep.subr.bf16.mxu0 0
        %2347 = vmatpush1.bf16.msra.mxu0 %v2323
        %2348 = vmatprep.subr.bf16.mxu0 0
        %2349 = vmatpush1.bf16.msra.mxu0 0
        %2350 = vmatprep.subr.bf16.mxu0 0
        %2351 = vmatpush1.bf16.msra.mxu0 0
        %2352 = vmatprep.subr.bf16.mxu0 0
        %2353 = vmatpush1.bf16.msra.mxu0 0
        %2354 = vmatprep.subr.bf16.mxu0 0
        %2355 = vmatpush1.bf16.msra.mxu0 0
        %2356 = vmatprep.subr.bf16.mxu0 0
        %2357 = vmatpush1.bf16.msra.mxu0 0
        %2358 = vmatprep.subr.bf16.mxu0 0
        %2359 = vmatpush1.bf16.msra.mxu0 0
        %2360 = vmatprep.subr.bf16.mxu0 0
        %2361 = vmatpush1.bf16.msra.mxu0 0
        %2362 = vmatprep.subr.bf16.mxu0 0
        %2363 = vmatpush1.bf16.msra.mxu0 0
        %2364 = vmatprep.subr.bf16.mxu0 0
        %2365 = vmatpush1.bf16.msra.mxu0 0
        %2366 = vmatprep.subr.bf16.mxu0 0
        %2367 = vmatpush1.bf16.msra.mxu0 0
        %2368 = vmatprep.subr.bf16.mxu0 0
        %2369 = vmatpush1.bf16.msra.mxu0 0
        %2370 = vmatprep.subr.bf16.mxu0 0
        %2371 = vmatpush1.bf16.msra.mxu0 0
        %2372 = vmatprep.mubr.bf16.mxu0 0
        %2373 = vmatmul.mubr.bf16.gmra.mrb[0].mxu0 %v2329
        %v2374 = vpop.f32.mrb[0].mxu0
        %v2375 = vadd.f32 %v2302, %v2374
        %v2376 = vpop.f32.mrb[0].mxu0
        %v2377 = vpop.f32.mrb[0].mxu0
        %v2378 = vadd.f32 %v2302, %v2377
        %v2379 = vpop.f32.mrb[0].mxu0
        %2380 = vmatprep.mubr.bf16.mxu0 0
        %2381 = vmatmul.mubr.bf16.gmra.mrb[0].mxu0 %v2332
        %v2382 = vpop.f32.mrb[0].mxu0
        %v2383 = vadd.f32 %v2302, %v2382
        %v2384 = vpop.f32.mrb[0].mxu0
        %v2385 = vpop.f32.mrb[0].mxu0
        %v2386 = vadd.f32 %v2302, %v2385
        %v2387 = vpop.f32.mrb[0].mxu0
        %2388 = vmatprep.mubr.bf16.mxu0 0
        %2389 = vmatmul.mubr.bf16.gmra.mrb[0].mxu0 %v2335
        %v2390 = vpop.f32.mrb[0].mxu0
        %v2391 = vadd.f32 %v2302, %v2390
        %v2392 = vpop.f32.mrb[0].mxu0
        %v2393 = vpop.f32.mrb[0].mxu0
        %v2394 = vadd.f32 %v2302, %v2393
        %v2395 = vpop.f32.mrb[0].mxu0
        %2396 = vmatprep.mubr.bf16.mxu0 0
        %2397 = vmatmul.mubr.bf16.gmra.mrb[0].mxu0 %v2338
        %v2398 = vpop.f32.mrb[0].mxu0
        %v2399 = vadd.f32 %v2302, %v2398
        %v2400 = vpop.f32.mrb[0].mxu0
        %v2401 = vpop.f32.mrb[0].mxu0
        %v2402 = vadd.f32 %v2302, %v2401
        %v2403 = vpop.f32.mrb[0].mxu0
        %2404 = vdwg.mxu0
        %v2405 = vpack.c.bf16 %v2378, %v2375
        %v2406 = vpack.c.bf16 %v2386, %v2383
        %v2407 = vpack.c.bf16 %v2394, %v2391
        %v2408 = vpack.c.bf16 %v2402, %v2399
        %v2413 = vunpack.c.l.b16 %v2405
        %v2414 = vunpack.c.h.b16 %v2405
        %v2415 = vunpack.c.l.b16 %v2406
        %v2416 = vunpack.c.h.b16 %v2406
        %v2417 = vunpack.c.l.b16 %v2407
        %v2418 = vunpack.c.h.b16 %v2407
        %v2419 = vunpack.c.l.b16 %v2408
        %v2420 = vunpack.c.h.b16 %v2408
        %v2421 = vpack.c.b16 %v2413, %v2413
        %v2422 = vpack.c.b16 %v2414, %v2414
        %v2423 = vpack.c.b16 %v2415, %v2415
        %v2424 = vpack.c.b16 %v2416, %v2416
        %v2425 = vpack.c.b16 %v2417, %v2417
        %v2426 = vpack.c.b16 %v2418, %v2418
        %v2427 = vpack.c.b16 %v2419, %v2419
        %v2428 = vpack.c.b16 %v2420, %v2420
        %vm2437 = vcmask 388096
        %2438 = vst.msk [vmem:[%s370] sm:$0xf] %vm2437, %v2421
        %2439 = vst.msk [vmem:[%s370 + $0x4] sm:$0xf] %vm2437, %v2422
        %2440 = vst.msk [vmem:[%s370 + $0x8] sm:$0xf] %vm2437, %v2423
        %2441 = vst.msk [vmem:[%s370 + $0xc] sm:$0xf] %vm2437, %v2424
        %2442 = vst.msk [vmem:[%s370 + $0x10] sm:$0xf] %vm2437, %v2425
        %2443 = vst.msk [vmem:[%s370 + $0x14] sm:$0xf] %vm2437, %v2426
        %2444 = vst.msk [vmem:[%s370 + $0x18] sm:$0xf] %vm2437, %v2427
        %2445 = vst.msk [vmem:[%s370 + $0x1c] sm:$0xf] %vm2437, %v2428
        %p2446 = scmp.lt.s32.totalorder %s22, 1
        %s2447 = scalar_select %p2446, %s22, 1
        %s2448 = smul.addr %s2447, 8
        %s2449 = smul.addr %s2448, 4
        %s2450 = scalar_lea.vmem %s9, %s2449
        // Predicated region
        $region69: #{decoder_forward.1} parent=55 // pred_check
          %p2451 = pneg %p234
        $region70: #{decoder_forward.1} parent=55 // pred_check_branch
          %2453 = sbr.rel (%p2451) target = $region72
        $region71: #{decoder_forward.1} parent=55 // pred_region
          _
        $region72: #{decoder_forward.1} parent=55 // pred_fallthru
          _
      $region56: #{decoder_forward.1} parent=5 // pred_fallthru
        _
      %p2454 = scmp.le.s32.totalorder 2, %s17
      // Predicated region
      $region73: #{decoder_forward.1} parent=5 // pred_check
        %p2455 = pneg %p2454
      $region74: #{decoder_forward.1} parent=5 // pred_check_branch
        %2457 = sbr.rel (%p2455) target = $region76
      $region75: #{decoder_forward.1} parent=5 // pred_region
        %s2458 = ssub.s32 %s17, 2
        // Predicated region
        $region77: #{decoder_forward.1} parent=75 // pred_check
          %p2459 = pneg %p240
        $region78: #{decoder_forward.1} parent=75 // pred_check_branch
          %2461 = sbr.rel (%p2459) target = $region80
        $region79: #{decoder_forward.1} parent=75 // pred_region
          %p2462 = scmp.lt.s32.totalorder %s23, 1
          %s2463 = scalar_select %p2462, %s23, 1
          %s2464 = smul.addr %s2463, 8
          %s2465 = smul.addr %s2464, 4
          %s2466 = scalar_lea.vmem %s9, %s2465
        $region80: #{decoder_forward.1} parent=75 // pred_fallthru
          _
      $region76: #{decoder_forward.1} parent=5 // pred_fallthru
        _
    $region6: #{decoder_forward.1} parent=1 // loop_footer
      %s21 = sadd.s32 1, %s17
    $region7: #{decoder_forward.1} parent=1 // loop_footer_branch
      %16 = sbr.rel target = $region3
    $region8: #{decoder_forward.1} parent=1 // loop_exit
      _
    %2467 = vsyncpa [#allocation4], 1
    %s2468 = scalar_lea.sflag [#allocation4], 1
    %2469 = vsyncpa %s2468, 1
    %2470 = vsyncpa [#allocation6], 1

</llo_original>
